<compile_context>
chip_gen: v7x
topology: tpu7x:2x2x1
jax: 0.10.0
libtpu: 0.0.40
codegen_flags: <defaults>
</compile_context>

<pallas_src>
import math

import jax
import jax.numpy as jnp
from jax.experimental import pallas as pl
from jax.experimental.pallas import tpu as pltpu


# ----------------------------------------------------------------------------
# Fused Pallas kernel (built per static (num_layers, T, B_pad, H) config)
# ----------------------------------------------------------------------------
def _build_fused_lstm_kernel(num_layers, T, B_pad, H):
    assert T >= 1 and num_layers >= 1, "degenerate config"

    def kernel(*refs):
        idx = 0
        x_ref = refs[idx]; idx += 1                            # (T*B_pad, Din0)
        wih0_ref, whh0_ref, b0_ref = refs[idx:idx + 3]; idx += 3
        upper = []                                             # layers 1..L-1
        for _ in range(num_layers - 1):
            upper.append((refs[idx], refs[idx + 1]))           # (2H,4H), (1,4H)
            idx += 2
        h0_ref, c0_ref, fcw_ref, fcb_ref = refs[idx:idx + 4]; idx += 4
        out_ref, hn_ref, cn_ref = refs[idx:idx + 3]; idx += 3
        gx_ref = refs[idx]                                     # scratch (T, B_pad, 4H)

        # Hoisted layer-0 input projection: ONE MXU matmul for the whole
        # sequence, written once into a sublane-aligned VMEM scratch so the
        # per-step read is a plain full-vreg vld off the critical chain.
        gx = (jnp.dot(x_ref[...], wih0_ref[...],
                      preferred_element_type=jnp.float32) + b0_ref[...])
        gx_ref[...] = gx.reshape(T, B_pad, 4 * H)

        whh0 = whh0_ref[...]                                   # (H, 4H)
        wcats = [w[...] for (w, _) in upper]                   # (2H, 4H) each
        bups = [b[...] for (_, b) in upper]                    # (1, 4H) each
        # TODO(synk): consider pltpu.matmul_push_rhs to keep whh0/wcats resident
        # in the MXU weight registers across the time loop (verify vs jnp.dot).

        h = [h0_ref[l] for l in range(num_layers)]             # (B_pad, H)
        c = [c0_ref[l] for l in range(num_layers)]
        first_h = None

        def cell(gates_scaled, c_prev):
            # g-gate columns were pre-scaled by 2 -> one sigmoid launch covers
            # i, f, o AND (via 2*s-1) tanh of the g pre-activation.
            s = jax.nn.sigmoid(gates_scaled)                   # (B_pad, 4H)
            i_g = s[:, 0 * H:1 * H]
            f_g = s[:, 1 * H:2 * H]
            g_g = 2.0 * s[:, 2 * H:3 * H] - 1.0                # == tanh(g_preact)
            o_g = s[:, 3 * H:4 * H]
            c_new = f_g * c_prev + i_g * g_g
            h_new = o_g * jnp.tanh(c_new)
            return h_new, c_new

        # Wavefront over time x layers (unrolled at trace time; T is small).
        # TODO(synk): nn.LSTM inter-layer dropout (training-mode only) is not
        # applied; the module is used with dropout=0.0 so semantics match.
        for w in range(T + num_layers - 1):
            updates = []
            for l in range(num_layers):
                t_l = w - l
                if t_l < 0 or t_l >= T:
                    continue
                if l == 0:
                    gates = gx_ref[t_l] + jnp.dot(
                        h[0], whh0, preferred_element_type=jnp.float32)
                else:
                    # h[l-1] has not been updated yet this wavefront step, so it
                    # holds layer l-1's hidden at exactly time t_l.
                    lhs = jnp.concatenate([h[l - 1], h[l]], axis=1)   # (B_pad, 2H)
                    gates = (jnp.dot(lhs, wcats[l - 1],
                                     preferred_element_type=jnp.float32)
                             + bups[l - 1])
                h_new, c_new = cell(gates, c[l])
                if l == num_layers - 1 and t_l == 0:
                    first_h = h_new                            # the only step fc consumes
                updates.append((l, h_new, c_new))
            for l, h_new, c_new in updates:                    # deferred state update
                h[l] = h_new
                c[l] = c_new

        for l in range(num_layers):                            # final states only
            hn_ref[l] = h[l]
            cn_ref[l] = c[l]

        # fc(F.normalize(first_h, p=2, dim=1)) with eps=1e-12 -> rsqrt on EUP.
        nsq = jnp.sum(first_h * first_h, axis=1, keepdims=True)
        inv = jax.lax.rsqrt(jnp.maximum(nsq, 1e-24))
        out_ref[...] = (jnp.dot(first_h * inv, fcw_ref[...],
                                preferred_element_type=jnp.float32)
                        + fcb_ref[...])

    return kernel


# ----------------------------------------------------------------------------
# One-time parameter prep + jitted forward wrapper
# ----------------------------------------------------------------------------
def prepare_params(raw_layers, fc_w, fc_b):
    """Pre-transpose, pre-combine and pre-scale (g-gate x2) weights once."""
    H = raw_layers[0][1].shape[1]                              # w_hh: (4H, H)

    def scale_g(a):                                            # cols [2H,3H) * 2
        return a.at[:, 2 * H:3 * H].multiply(2.0)

    w_ih0, w_hh0, b_ih0, b_hh0 = raw_layers[0]
    params = {
        "wih0_t": scale_g(jnp.transpose(w_ih0)),               # (Din, 4H)
        "whh0_t": scale_g(jnp.transpose(w_hh0)),               # (H, 4H)
        "b0": scale_g((b_ih0 + b_hh0).reshape(1, -1)),         # (1, 4H)
        "upper": [],
        "fc_w_t": jnp.transpose(fc_w),                         # (H, O)
        "fc_b2": fc_b.reshape(1, -1),                          # (1, O)
    }
    for (w_ih, w_hh, b_ih, b_hh) in raw_layers[1:]:
        wcat = jnp.concatenate([jnp.transpose(w_ih), jnp.transpose(w_hh)],
                               axis=0)                         # (2H, 4H)
        params["upper"].append((scale_g(wcat),
                                scale_g((b_ih + b_hh).reshape(1, -1))))
    # TODO(synk): optionally cast matmul weights to bf16 (keep f32 accum) for
    # ~3x MXU throughput; skipped to keep the 1e-3 recurrence tolerance safe.
    return params


def _lstm_forward(params, x_bct, hidden):
    """Mirrors LSTM.forward: returns (output[:, :, 0], (h_n, c_n))."""
    h0, c0 = hidden                                            # (L, B, H)
    L, B, H = h0.shape
    _, Din, T = x_bct.shape
    O = params["fc_b2"].shape[-1]

    B_pad = ((B + 7) // 8) * 8                                 # sublane-align batch
    pad = B_pad - B

    # (B, Din, T) -> time-major (T, B_pad, Din) -> 2-D slab (T*B_pad, Din).
    x_tbd = jnp.transpose(x_bct, (2, 0, 1))
    x2d = jnp.pad(x_tbd, ((0, 0), (0, pad), (0, 0))).reshape(T * B_pad, Din)
    h0_p = jnp.pad(h0, ((0, 0), (0, pad), (0, 0)))
    c0_p = jnp.pad(c0, ((0, 0), (0, pad), (0, 0)))

    flat = [params["wih0_t"], params["whh0_t"], params["b0"]]
    for (wcat, b) in params["upper"]:
        flat += [wcat, b]

    vmem = pl.BlockSpec(memory_space=pltpu.MemorySpace.VMEM)
    n_in = 1 + 3 + 2 * (L - 1) + 4

    out_p, hn_p, cn_p = pl.pallas_call(
        _build_fused_lstm_kernel(L, T, B_pad, H),
        out_shape=(
            jax.ShapeDtypeStruct((B_pad, O), jnp.float32),
            jax.ShapeDtypeStruct((L, B_pad, H), jnp.float32),
            jax.ShapeDtypeStruct((L, B_pad, H), jnp.float32),
        ),
        in_specs=[vmem] * n_in,
        out_specs=(vmem, vmem, vmem),
        scratch_shapes=[pltpu.VMEM((T, B_pad, 4 * H), jnp.float32)],
    )(x2d, *flat, h0_p, c0_p, params["fc_w_t"], params["fc_b2"])

    # Drop the padded batch rows (lane/sublane-sparse, one-time, negligible).
    return out_p[:B], (hn_p[:, :B], cn_p[:, :B])


lstm_forward = jax.jit(_lstm_forward)


# ----------------------------------------------------------------------------
# Pure-JAX reference (for correctness check only)
# ----------------------------------------------------------------------------
def reference_forward(raw_layers, fc_w, fc_b, x_bct, hidden):
    h0, c0 = hidden
    x = jnp.transpose(x_bct, (2, 0, 1))                        # (T, B, Din)

    def run_layer(xs, w_ih, w_hh, b, h0l, c0l):
        def step(carry, x_t):
            h, c = carry
            gates = x_t @ w_ih.T + h @ w_hh.T + b
            i, f, g, o = jnp.split(gates, 4, axis=-1)
            i = jax.nn.sigmoid(i)
            f = jax.nn.sigmoid(f)
            g = jnp.tanh(g)
            o = jax.nn.sigmoid(o)
            c = f * c + i * g
            h = o * jnp.tanh(c)
            return (h, c), h
        (hn, cn), ys = jax.lax.scan(step, (h0l, c0l), xs)
        return ys, hn, cn

    hs, cs = [], []
    inp = x
    for l, (w_ih, w_hh, b_ih, b_hh) in enumerate(raw_layers):
        inp, hn, cn = run_layer(inp, w_ih, w_hh, b_ih + b_hh, h0[l], c0[l])
        hs.append(hn)
        cs.append(cn)

    first_h = inp[0]                                           # (B, H)
    n = jnp.maximum(jnp.linalg.norm(first_h, axis=1, keepdims=True), 1e-12)
    out = (first_h / n) @ fc_w.T + fc_b
    return out, (jnp.stack(hs, axis=0), jnp.stack(cs, axis=0))


# ----------------------------------------------------------------------------
# Main
# ----------------------------------------------------------------------------
if __name__ == "__main__":
    B, input_dim, T = 2, 4, 8
    hidden_dim, num_layers, output_dim = 32, 2, 3
    out_point, dropout = 2, 0.0   # only output[:, :, 0] (time step 0) is returned

    key = jax.random.PRNGKey(0)
    keys = jax.random.split(key, 4 * num_layers + 5)
    k_bound = 1.0 / math.sqrt(hidden_dim)

    ki = 0
    raw_layers = []
    for l in range(num_layers):
        in_l = input_dim if l == 0 else hidden_dim
        w_ih = jax.random.uniform(keys[ki], (4 * hidden_dim, in_l),
                                  jnp.float32, -k_bound, k_bound); ki += 1
        w_hh = jax.random.uniform(keys[ki], (4 * hidden_dim, hidden_dim),
                                  jnp.float32, -k_bound, k_bound); ki += 1
        b_ih = jax.random.uniform(keys[ki], (4 * hidden_dim,),
                                  jnp.float32, -k_bound, k_bound); ki += 1
        b_hh = jax.random.uniform(keys[ki], (4 * hidden_dim,),
                                  jnp.float32, -k_bound, k_bound); ki += 1
        raw_layers.append((w_ih, w_hh, b_ih, b_hh))
    fc_w = jax.random.uniform(keys[ki], (output_dim, hidden_dim),
                              jnp.float32, -k_bound, k_bound); ki += 1
    fc_b = jax.random.uniform(keys[ki], (output_dim,),
                              jnp.float32, -k_bound, k_bound); ki += 1

    params = prepare_params(raw_layers, fc_w, fc_b)            # one-time prep

    x = jax.random.normal(keys[ki], (B, input_dim, T), jnp.float32); ki += 1
    h0 = jax.random.normal(keys[ki], (num_layers, B, hidden_dim), jnp.float32); ki += 1
    c0 = jax.random.normal(keys[ki], (num_layers, B, hidden_dim), jnp.float32); ki += 1

    out, (h_n, c_n) = lstm_forward(params, x, (h0, c0))
    jax.block_until_ready((out, h_n, c_n))

    ref_out, (ref_h, ref_c) = reference_forward(raw_layers, fc_w, fc_b, x, (h0, c0))
    assert out.shape == (B, output_dim)
    assert h_n.shape == (num_layers, B, hidden_dim)
    assert c_n.shape == (num_layers, B, hidden_dim)
    assert jnp.allclose(out, ref_out, rtol=1e-3, atol=1e-3)
    assert jnp.allclose(h_n, ref_h, rtol=1e-3, atol=1e-3)
    assert jnp.allclose(c_n, ref_c, rtol=1e-3, atol=1e-3)

    print("KERNEL_OK")
</pallas_src>

<mosaic_0001>
module attributes {stable_mosaic.version = 11 : i64} {
  func.func @kernel(%arg0: memref<64x4xf32, #tpu.memory_space<vmem>>, %arg1: memref<4x128xf32, #tpu.memory_space<vmem>>, %arg2: memref<32x128xf32, #tpu.memory_space<vmem>>, %arg3: memref<1x128xf32, #tpu.memory_space<vmem>>, %arg4: memref<64x128xf32, #tpu.memory_space<vmem>>, %arg5: memref<1x128xf32, #tpu.memory_space<vmem>>, %arg6: memref<2x8x32xf32, #tpu.memory_space<vmem>>, %arg7: memref<2x8x32xf32, #tpu.memory_space<vmem>>, %arg8: memref<32x3xf32, #tpu.memory_space<vmem>>, %arg9: memref<1x3xf32, #tpu.memory_space<vmem>>, %arg10: memref<8x3xf32, #tpu.memory_space<vmem>>, %arg11: memref<2x8x32xf32, #tpu.memory_space<vmem>>, %arg12: memref<2x8x32xf32, #tpu.memory_space<vmem>>, %arg13: memref<8x8x128xf32, #tpu.memory_space<vmem>>) attributes {dimension_semantics = [], scalar_prefetch = 0 : i64, scratch_operands = 1 : i64, tpu.core_type = #tpu.core_type<tc>} {
    %c0 = arith.constant 0 : index
    %c0_0 = arith.constant 0 : index
    %0 = vector.load %arg0[%c0, %c0_0] : memref<64x4xf32, #tpu.memory_space<vmem>>, vector<64x4xf32>
    %c0_1 = arith.constant 0 : index
    %c0_2 = arith.constant 0 : index
    %1 = vector.load %arg1[%c0_1, %c0_2] : memref<4x128xf32, #tpu.memory_space<vmem>>, vector<4x128xf32>
    %cst = arith.constant dense<0.000000e+00> : vector<64x128xf32>
    %2 = tpu.matmul %0, %1, %cst {dimension_numbers = #tpu.dot_dimension_numbers<[1], [0], [0], [1], [0, 0, 1, 1], [], []>} : vector<64x4xf32>, vector<4x128xf32>, vector<64x128xf32> -> vector<64x128xf32>
    %c0_3 = arith.constant 0 : index
    %c0_4 = arith.constant 0 : index
    %3 = vector.load %arg3[%c0_3, %c0_4] : memref<1x128xf32, #tpu.memory_space<vmem>>, vector<1x128xf32>
    %4 = vector.broadcast %3 : vector<1x128xf32> to vector<64x128xf32>
    %5 = arith.addf %2, %4 : vector<64x128xf32>
    %6 = vector.shape_cast %5 : vector<64x128xf32> to vector<8x8x128xf32>
    %c0_5 = arith.constant 0 : index
    %c0_6 = arith.constant 0 : index
    %c0_7 = arith.constant 0 : index
    %7 = vector.load %arg13[%c0_5, %c0_6, %c0_7] : memref<8x8x128xf32, #tpu.memory_space<vmem>>, vector<8x8x128xf32>
    tpu.vector_store %arg13[%c0_5, %c0_6, %c0_7], %6 {strides = array<i32>} : memref<8x8x128xf32, #tpu.memory_space<vmem>>, vector<8x8x128xf32>,
    %c0_8 = arith.constant 0 : index
    %c0_9 = arith.constant 0 : index
    %8 = vector.load %arg2[%c0_8, %c0_9] : memref<32x128xf32, #tpu.memory_space<vmem>>, vector<32x128xf32>
    %c0_10 = arith.constant 0 : index
    %c0_11 = arith.constant 0 : index
    %9 = vector.load %arg4[%c0_10, %c0_11] : memref<64x128xf32, #tpu.memory_space<vmem>>, vector<64x128xf32>
    %c0_12 = arith.constant 0 : index
    %c0_13 = arith.constant 0 : index
    %10 = vector.load %arg5[%c0_12, %c0_13] : memref<1x128xf32, #tpu.memory_space<vmem>>, vector<1x128xf32>
    %c0_14 = arith.constant 0 : index
    %c0_15 = arith.constant 0 : index
    %c0_16 = arith.constant 0 : index
    %11 = vector.load %arg6[%c0_14, %c0_15, %c0_16] : memref<2x8x32xf32, #tpu.memory_space<vmem>>, vector<1x8x32xf32>
    %12 = vector.shape_cast %11 : vector<1x8x32xf32> to vector<8x32xf32>
    %c1 = arith.constant 1 : index
    %c0_17 = arith.constant 0 : index
    %c0_18 = arith.constant 0 : index
    %13 = vector.load %arg6[%c1, %c0_17, %c0_18] : memref<2x8x32xf32, #tpu.memory_space<vmem>>, vector<1x8x32xf32>
    %14 = vector.shape_cast %13 : vector<1x8x32xf32> to vector<8x32xf32>
    %c0_19 = arith.constant 0 : index
    %c0_20 = arith.constant 0 : index
    %c0_21 = arith.constant 0 : index
    %15 = vector.load %arg7[%c0_19, %c0_20, %c0_21] : memref<2x8x32xf32, #tpu.memory_space<vmem>>, vector<1x8x32xf32>
    %16 = vector.shape_cast %15 : vector<1x8x32xf32> to vector<8x32xf32>
    %c1_22 = arith.constant 1 : index
    %c0_23 = arith.constant 0 : index
    %c0_24 = arith.constant 0 : index
    %17 = vector.load %arg7[%c1_22, %c0_23, %c0_24] : memref<2x8x32xf32, #tpu.memory_space<vmem>>, vector<1x8x32xf32>
    %18 = vector.shape_cast %17 : vector<1x8x32xf32> to vector<8x32xf32>
    %c0_25 = arith.constant 0 : index
    %c0_26 = arith.constant 0 : index
    %c0_27 = arith.constant 0 : index
    %19 = vector.load %arg13[%c0_25, %c0_26, %c0_27] : memref<8x8x128xf32, #tpu.memory_space<vmem>>, vector<1x8x128xf32>
    %20 = vector.shape_cast %19 : vector<1x8x128xf32> to vector<8x128xf32>
    %cst_28 = arith.constant dense<0.000000e+00> : vector<8x128xf32>
    %21 = tpu.matmul %12, %8, %cst_28 {dimension_numbers = #tpu.dot_dimension_numbers<[1], [0], [0], [1], [0, 0, 1, 1], [], []>} : vector<8x32xf32>, vector<32x128xf32>, vector<8x128xf32> -> vector<8x128xf32>
    %22 = arith.addf %20, %21 : vector<8x128xf32>
    %23 = arith.negf %22 : vector<8x128xf32>
    %24 = math.exp %23 : vector<8x128xf32>
    %cst_29 = arith.constant 1.000000e+00 : f32
    %25 = vector.broadcast %cst_29 : f32 to vector<8x128xf32>
    %26 = arith.addf %25, %24 : vector<8x128xf32>
    %27 = arith.divf %25, %26 : vector<8x128xf32>
    %28 = vector.extract_strided_slice %27 {offsets = [0, 0], sizes = [8, 32], strides = [1, 1]} : vector<8x128xf32> to vector<8x32xf32>
    %29 = vector.extract_strided_slice %27 {offsets = [0, 32], sizes = [8, 32], strides = [1, 1]} : vector<8x128xf32> to vector<8x32xf32>
    %30 = vector.extract_strided_slice %27 {offsets = [0, 64], sizes = [8, 32], strides = [1, 1]} : vector<8x128xf32> to vector<8x32xf32>
    %cst_30 = arith.constant 2.000000e+00 : f32
    %31 = vector.broadcast %cst_30 : f32 to vector<8x32xf32>
    %32 = arith.mulf %31, %30 : vector<8x32xf32>
    %cst_31 = arith.constant 1.000000e+00 : f32
    %33 = vector.broadcast %cst_31 : f32 to vector<8x32xf32>
    %34 = arith.subf %32, %33 : vector<8x32xf32>
    %35 = vector.extract_strided_slice %27 {offsets = [0, 96], sizes = [8, 32], strides = [1, 1]} : vector<8x128xf32> to vector<8x32xf32>
    %36 = arith.mulf %29, %16 : vector<8x32xf32>
    %37 = arith.mulf %28, %34 : vector<8x32xf32>
    %38 = arith.addf %36, %37 : vector<8x32xf32>
    %39 = math.tanh %38 : vector<8x32xf32>
    %40 = arith.mulf %35, %39 : vector<8x32xf32>
    %c1_32 = arith.constant 1 : index
    %c0_33 = arith.constant 0 : index
    %c0_34 = arith.constant 0 : index
    %41 = vector.load %arg13[%c1_32, %c0_33, %c0_34] : memref<8x8x128xf32, #tpu.memory_space<vmem>>, vector<1x8x128xf32>
    %42 = vector.shape_cast %41 : vector<1x8x128xf32> to vector<8x128xf32>
    %cst_35 = arith.constant dense<0.000000e+00> : vector<8x128xf32>
    %43 = tpu.matmul %40, %8, %cst_35 {dimension_numbers = #tpu.dot_dimension_numbers<[1], [0], [0], [1], [0, 0, 1, 1], [], []>} : vector<8x32xf32>, vector<32x128xf32>, vector<8x128xf32> -> vector<8x128xf32>
    %44 = arith.addf %42, %43 : vector<8x128xf32>
    %45 = arith.negf %44 : vector<8x128xf32>
    %46 = math.exp %45 : vector<8x128xf32>
    %cst_36 = arith.constant 1.000000e+00 : f32
    %47 = vector.broadcast %cst_36 : f32 to vector<8x128xf32>
    %48 = arith.addf %47, %46 : vector<8x128xf32>
    %49 = arith.divf %47, %48 : vector<8x128xf32>
    %50 = vector.extract_strided_slice %49 {offsets = [0, 0], sizes = [8, 32], strides = [1, 1]} : vector<8x128xf32> to vector<8x32xf32>
    %51 = vector.extract_strided_slice %49 {offsets = [0, 32], sizes = [8, 32], strides = [1, 1]} : vector<8x128xf32> to vector<8x32xf32>
    %52 = vector.extract_strided_slice %49 {offsets = [0, 64], sizes = [8, 32], strides = [1, 1]} : vector<8x128xf32> to vector<8x32xf32>
    %cst_37 = arith.constant 2.000000e+00 : f32
    %53 = vector.broadcast %cst_37 : f32 to vector<8x32xf32>
    %54 = arith.mulf %53, %52 : vector<8x32xf32>
    %cst_38 = arith.constant 1.000000e+00 : f32
    %55 = vector.broadcast %cst_38 : f32 to vector<8x32xf32>
    %56 = arith.subf %54, %55 : vector<8x32xf32>
    %57 = vector.extract_strided_slice %49 {offsets = [0, 96], sizes = [8, 32], strides = [1, 1]} : vector<8x128xf32> to vector<8x32xf32>
    %58 = arith.mulf %51, %38 : vector<8x32xf32>
    %59 = arith.mulf %50, %56 : vector<8x32xf32>
    %60 = arith.addf %58, %59 : vector<8x32xf32>
    %61 = math.tanh %60 : vector<8x32xf32>
    %62 = arith.mulf %57, %61 : vector<8x32xf32>
    %63 = tpu.concatenate %40, %14 in 1 : vector<8x32xf32>, vector<8x32xf32> -> vector<8x64xf32>
    %cst_39 = arith.constant dense<0.000000e+00> : vector<8x128xf32>
    %64 = tpu.matmul %63, %9, %cst_39 {dimension_numbers = #tpu.dot_dimension_numbers<[1], [0], [0], [1], [0, 0, 1, 1], [], []>} : vector<8x64xf32>, vector<64x128xf32>, vector<8x128xf32> -> vector<8x128xf32>
    %65 = vector.broadcast %10 : vector<1x128xf32> to vector<8x128xf32>
    %66 = arith.addf %64, %65 : vector<8x128xf32>
    %67 = arith.negf %66 : vector<8x128xf32>
    %68 = math.exp %67 : vector<8x128xf32>
    %cst_40 = arith.constant 1.000000e+00 : f32
    %69 = vector.broadcast %cst_40 : f32 to vector<8x128xf32>
    %70 = arith.addf %69, %68 : vector<8x128xf32>
    %71 = arith.divf %69, %70 : vector<8x128xf32>
    %72 = vector.extract_strided_slice %71 {offsets = [0, 0], sizes = [8, 32], strides = [1, 1]} : vector<8x128xf32> to vector<8x32xf32>
    %73 = vector.extract_strided_slice %71 {offsets = [0, 32], sizes = [8, 32], strides = [1, 1]} : vector<8x128xf32> to vector<8x32xf32>
    %74 = vector.extract_strided_slice %71 {offsets = [0, 64], sizes = [8, 32], strides = [1, 1]} : vector<8x128xf32> to vector<8x32xf32>
    %cst_41 = arith.constant 2.000000e+00 : f32
    %75 = vector.broadcast %cst_41 : f32 to vector<8x32xf32>
    %76 = arith.mulf %75, %74 : vector<8x32xf32>
    %cst_42 = arith.constant 1.000000e+00 : f32
    %77 = vector.broadcast %cst_42 : f32 to vector<8x32xf32>
    %78 = arith.subf %76, %77 : vector<8x32xf32>
    %79 = vector.extract_strided_slice %71 {offsets = [0, 96], sizes = [8, 32], strides = [1, 1]} : vector<8x128xf32> to vector<8x32xf32>
    %80 = arith.mulf %73, %18 : vector<8x32xf32>
    %81 = arith.mulf %72, %78 : vector<8x32xf32>
    %82 = arith.addf %80, %81 : vector<8x32xf32>
    %83 = math.tanh %82 : vector<8x32xf32>
    %84 = arith.mulf %79, %83 : vector<8x32xf32>
    %c2 = arith.constant 2 : index
    %c0_43 = arith.constant 0 : index
    %c0_44 = arith.constant 0 : index
    %85 = vector.load %arg13[%c2, %c0_43, %c0_44] : memref<8x8x128xf32, #tpu.memory_space<vmem>>, vector<1x8x128xf32>
    %86 = vector.shape_cast %85 : vector<1x8x128xf32> to vector<8x128xf32>
    %cst_45 = arith.constant dense<0.000000e+00> : vector<8x128xf32>
    %87 = tpu.matmul %62, %8, %cst_45 {dimension_numbers = #tpu.dot_dimension_numbers<[1], [0], [0], [1], [0, 0, 1, 1], [], []>} : vector<8x32xf32>, vector<32x128xf32>, vector<8x128xf32> -> vector<8x128xf32>
    %88 = arith.addf %86, %87 : vector<8x128xf32>
    %89 = arith.negf %88 : vector<8x128xf32>
    %90 = math.exp %89 : vector<8x128xf32>
    %cst_46 = arith.constant 1.000000e+00 : f32
    %91 = vector.broadcast %cst_46 : f32 to vector<8x128xf32>
    %92 = arith.addf %91, %90 : vector<8x128xf32>
    %93 = arith.divf %91, %92 : vector<8x128xf32>
    %94 = vector.extract_strided_slice %93 {offsets = [0, 0], sizes = [8, 32], strides = [1, 1]} : vector<8x128xf32> to vector<8x32xf32>
    %95 = vector.extract_strided_slice %93 {offsets = [0, 32], sizes = [8, 32], strides = [1, 1]} : vector<8x128xf32> to vector<8x32xf32>
    %96 = vector.extract_strided_slice %93 {offsets = [0, 64], sizes = [8, 32], strides = [1, 1]} : vector<8x128xf32> to vector<8x32xf32>
    %cst_47 = arith.constant 2.000000e+00 : f32
    %97 = vector.broadcast %cst_47 : f32 to vector<8x32xf32>
    %98 = arith.mulf %97, %96 : vector<8x32xf32>
    %cst_48 = arith.constant 1.000000e+00 : f32
    %99 = vector.broadcast %cst_48 : f32 to vector<8x32xf32>
    %100 = arith.subf %98, %99 : vector<8x32xf32>
    %101 = vector.extract_strided_slice %93 {offsets = [0, 96], sizes = [8, 32], strides = [1, 1]} : vector<8x128xf32> to vector<8x32xf32>
    %102 = arith.mulf %95, %60 : vector<8x32xf32>
    %103 = arith.mulf %94, %100 : vector<8x32xf32>
    %104 = arith.addf %102, %103 : vector<8x32xf32>
    %105 = math.tanh %104 : vector<8x32xf32>
    %106 = arith.mulf %101, %105 : vector<8x32xf32>
    %107 = tpu.concatenate %62, %84 in 1 : vector<8x32xf32>, vector<8x32xf32> -> vector<8x64xf32>
    %cst_49 = arith.constant dense<0.000000e+00> : vector<8x128xf32>
    %108 = tpu.matmul %107, %9, %cst_49 {dimension_numbers = #tpu.dot_dimension_numbers<[1], [0], [0], [1], [0, 0, 1, 1], [], []>} : vector<8x64xf32>, vector<64x128xf32>, vector<8x128xf32> -> vector<8x128xf32>
    %109 = vector.broadcast %10 : vector<1x128xf32> to vector<8x128xf32>
    %110 = arith.addf %108, %109 : vector<8x128xf32>
    %111 = arith.negf %110 : vector<8x128xf32>
    %112 = math.exp %111 : vector<8x128xf32>
    %cst_50 = arith.constant 1.000000e+00 : f32
    %113 = vector.broadcast %cst_50 : f32 to vector<8x128xf32>
    %114 = arith.addf %113, %112 : vector<8x128xf32>
    %115 = arith.divf %113, %114 : vector<8x128xf32>
    %116 = vector.extract_strided_slice %115 {offsets = [0, 0], sizes = [8, 32], strides = [1, 1]} : vector<8x128xf32> to vector<8x32xf32>
    %117 = vector.extract_strided_slice %115 {offsets = [0, 32], sizes = [8, 32], strides = [1, 1]} : vector<8x128xf32> to vector<8x32xf32>
    %118 = vector.extract_strided_slice %115 {offsets = [0, 64], sizes = [8, 32], strides = [1, 1]} : vector<8x128xf32> to vector<8x32xf32>
    %cst_51 = arith.constant 2.000000e+00 : f32
    %119 = vector.broadcast %cst_51 : f32 to vector<8x32xf32>
    %120 = arith.mulf %119, %118 : vector<8x32xf32>
    %cst_52 = arith.constant 1.000000e+00 : f32
    %121 = vector.broadcast %cst_52 : f32 to vector<8x32xf32>
    %122 = arith.subf %120, %121 : vector<8x32xf32>
    %123 = vector.extract_strided_slice %115 {offsets = [0, 96], sizes = [8, 32], strides = [1, 1]} : vector<8x128xf32> to vector<8x32xf32>
    %124 = arith.mulf %117, %82 : vector<8x32xf32>
    %125 = arith.mulf %116, %122 : vector<8x32xf32>
    %126 = arith.addf %124, %125 : vector<8x32xf32>
    %127 = math.tanh %126 : vector<8x32xf32>
    %128 = arith.mulf %123, %127 : vector<8x32xf32>
    %c3 = arith.constant 3 : index
    %c0_53 = arith.constant 0 : index
    %c0_54 = arith.constant 0 : index
    %129 = vector.load %arg13[%c3, %c0_53, %c0_54] : memref<8x8x128xf32, #tpu.memory_space<vmem>>, vector<1x8x128xf32>
    %130 = vector.shape_cast %129 : vector<1x8x128xf32> to vector<8x128xf32>
    %cst_55 = arith.constant dense<0.000000e+00> : vector<8x128xf32>
    %131 = tpu.matmul %106, %8, %cst_55 {dimension_numbers = #tpu.dot_dimension_numbers<[1], [0], [0], [1], [0, 0, 1, 1], [], []>} : vector<8x32xf32>, vector<32x128xf32>, vector<8x128xf32> -> vector<8x128xf32>
    %132 = arith.addf %130, %131 : vector<8x128xf32>
    %133 = arith.negf %132 : vector<8x128xf32>
    %134 = math.exp %133 : vector<8x128xf32>
    %cst_56 = arith.constant 1.000000e+00 : f32
    %135 = vector.broadcast %cst_56 : f32 to vector<8x128xf32>
    %136 = arith.addf %135, %134 : vector<8x128xf32>
    %137 = arith.divf %135, %136 : vector<8x128xf32>
    %138 = vector.extract_strided_slice %137 {offsets = [0, 0], sizes = [8, 32], strides = [1, 1]} : vector<8x128xf32> to vector<8x32xf32>
    %139 = vector.extract_strided_slice %137 {offsets = [0, 32], sizes = [8, 32], strides = [1, 1]} : vector<8x128xf32> to vector<8x32xf32>
    %140 = vector.extract_strided_slice %137 {offsets = [0, 64], sizes = [8, 32], strides = [1, 1]} : vector<8x128xf32> to vector<8x32xf32>
    %cst_57 = arith.constant 2.000000e+00 : f32
    %141 = vector.broadcast %cst_57 : f32 to vector<8x32xf32>
    %142 = arith.mulf %141, %140 : vector<8x32xf32>
    %cst_58 = arith.constant 1.000000e+00 : f32
    %143 = vector.broadcast %cst_58 : f32 to vector<8x32xf32>
    %144 = arith.subf %142, %143 : vector<8x32xf32>
    %145 = vector.extract_strided_slice %137 {offsets = [0, 96], sizes = [8, 32], strides = [1, 1]} : vector<8x128xf32> to vector<8x32xf32>
    %146 = arith.mulf %139, %104 : vector<8x32xf32>
    %147 = arith.mulf %138, %144 : vector<8x32xf32>
    %148 = arith.addf %146, %147 : vector<8x32xf32>
    %149 = math.tanh %148 : vector<8x32xf32>
    %150 = arith.mulf %145, %149 : vector<8x32xf32>
    %151 = tpu.concatenate %106, %128 in 1 : vector<8x32xf32>, vector<8x32xf32> -> vector<8x64xf32>
    %cst_59 = arith.constant dense<0.000000e+00> : vector<8x128xf32>
    %152 = tpu.matmul %151, %9, %cst_59 {dimension_numbers = #tpu.dot_dimension_numbers<[1], [0], [0], [1], [0, 0, 1, 1], [], []>} : vector<8x64xf32>, vector<64x128xf32>, vector<8x128xf32> -> vector<8x128xf32>
    %153 = vector.broadcast %10 : vector<1x128xf32> to vector<8x128xf32>
    %154 = arith.addf %152, %153 : vector<8x128xf32>
    %155 = arith.negf %154 : vector<8x128xf32>
    %156 = math.exp %155 : vector<8x128xf32>
    %cst_60 = arith.constant 1.000000e+00 : f32
    %157 = vector.broadcast %cst_60 : f32 to vector<8x128xf32>
    %158 = arith.addf %157, %156 : vector<8x128xf32>
    %159 = arith.divf %157, %158 : vector<8x128xf32>
    %160 = vector.extract_strided_slice %159 {offsets = [0, 0], sizes = [8, 32], strides = [1, 1]} : vector<8x128xf32> to vector<8x32xf32>
    %161 = vector.extract_strided_slice %159 {offsets = [0, 32], sizes = [8, 32], strides = [1, 1]} : vector<8x128xf32> to vector<8x32xf32>
    %162 = vector.extract_strided_slice %159 {offsets = [0, 64], sizes = [8, 32], strides = [1, 1]} : vector<8x128xf32> to vector<8x32xf32>
    %cst_61 = arith.constant 2.000000e+00 : f32
    %163 = vector.broadcast %cst_61 : f32 to vector<8x32xf32>
    %164 = arith.mulf %163, %162 : vector<8x32xf32>
    %cst_62 = arith.constant 1.000000e+00 : f32
    %165 = vector.broadcast %cst_62 : f32 to vector<8x32xf32>
    %166 = arith.subf %164, %165 : vector<8x32xf32>
    %167 = vector.extract_strided_slice %159 {offsets = [0, 96], sizes = [8, 32], strides = [1, 1]} : vector<8x128xf32> to vector<8x32xf32>
    %168 = arith.mulf %161, %126 : vector<8x32xf32>
    %169 = arith.mulf %160, %166 : vector<8x32xf32>
    %170 = arith.addf %168, %169 : vector<8x32xf32>
    %171 = math.tanh %170 : vector<8x32xf32>
    %172 = arith.mulf %167, %171 : vector<8x32xf32>
    %c4 = arith.constant 4 : index
    %c0_63 = arith.constant 0 : index
    %c0_64 = arith.constant 0 : index
    %173 = vector.load %arg13[%c4, %c0_63, %c0_64] : memref<8x8x128xf32, #tpu.memory_space<vmem>>, vector<1x8x128xf32>
    %174 = vector.shape_cast %173 : vector<1x8x128xf32> to vector<8x128xf32>
    %cst_65 = arith.constant dense<0.000000e+00> : vector<8x128xf32>
    %175 = tpu.matmul %150, %8, %cst_65 {dimension_numbers = #tpu.dot_dimension_numbers<[1], [0], [0], [1], [0, 0, 1, 1], [], []>} : vector<8x32xf32>, vector<32x128xf32>, vector<8x128xf32> -> vector<8x128xf32>
    %176 = arith.addf %174, %175 : vector<8x128xf32>
    %177 = arith.negf %176 : vector<8x128xf32>
    %178 = math.exp %177 : vector<8x128xf32>
    %cst_66 = arith.constant 1.000000e+00 : f32
    %179 = vector.broadcast %cst_66 : f32 to vector<8x128xf32>
    %180 = arith.addf %179, %178 : vector<8x128xf32>
    %181 = arith.divf %179, %180 : vector<8x128xf32>
    %182 = vector.extract_strided_slice %181 {offsets = [0, 0], sizes = [8, 32], strides = [1, 1]} : vector<8x128xf32> to vector<8x32xf32>
    %183 = vector.extract_strided_slice %181 {offsets = [0, 32], sizes = [8, 32], strides = [1, 1]} : vector<8x128xf32> to vector<8x32xf32>
    %184 = vector.extract_strided_slice %181 {offsets = [0, 64], sizes = [8, 32], strides = [1, 1]} : vector<8x128xf32> to vector<8x32xf32>
    %cst_67 = arith.constant 2.000000e+00 : f32
    %185 = vector.broadcast %cst_67 : f32 to vector<8x32xf32>
    %186 = arith.mulf %185, %184 : vector<8x32xf32>
    %cst_68 = arith.constant 1.000000e+00 : f32
    %187 = vector.broadcast %cst_68 : f32 to vector<8x32xf32>
    %188 = arith.subf %186, %187 : vector<8x32xf32>
    %189 = vector.extract_strided_slice %181 {offsets = [0, 96], sizes = [8, 32], strides = [1, 1]} : vector<8x128xf32> to vector<8x32xf32>
    %190 = arith.mulf %183, %148 : vector<8x32xf32>
    %191 = arith.mulf %182, %188 : vector<8x32xf32>
    %192 = arith.addf %190, %191 : vector<8x32xf32>
    %193 = math.tanh %192 : vector<8x32xf32>
    %194 = arith.mulf %189, %193 : vector<8x32xf32>
    %195 = tpu.concatenate %150, %172 in 1 : vector<8x32xf32>, vector<8x32xf32> -> vector<8x64xf32>
    %cst_69 = arith.constant dense<0.000000e+00> : vector<8x128xf32>
    %196 = tpu.matmul %195, %9, %cst_69 {dimension_numbers = #tpu.dot_dimension_numbers<[1], [0], [0], [1], [0, 0, 1, 1], [], []>} : vector<8x64xf32>, vector<64x128xf32>, vector<8x128xf32> -> vector<8x128xf32>
    %197 = vector.broadcast %10 : vector<1x128xf32> to vector<8x128xf32>
    %198 = arith.addf %196, %197 : vector<8x128xf32>
    %199 = arith.negf %198 : vector<8x128xf32>
    %200 = math.exp %199 : vector<8x128xf32>
    %cst_70 = arith.constant 1.000000e+00 : f32
    %201 = vector.broadcast %cst_70 : f32 to vector<8x128xf32>
    %202 = arith.addf %201, %200 : vector<8x128xf32>
    %203 = arith.divf %201, %202 : vector<8x128xf32>
    %204 = vector.extract_strided_slice %203 {offsets = [0, 0], sizes = [8, 32], strides = [1, 1]} : vector<8x128xf32> to vector<8x32xf32>
    %205 = vector.extract_strided_slice %203 {offsets = [0, 32], sizes = [8, 32], strides = [1, 1]} : vector<8x128xf32> to vector<8x32xf32>
    %206 = vector.extract_strided_slice %203 {offsets = [0, 64], sizes = [8, 32], strides = [1, 1]} : vector<8x128xf32> to vector<8x32xf32>
    %cst_71 = arith.constant 2.000000e+00 : f32
    %207 = vector.broadcast %cst_71 : f32 to vector<8x32xf32>
    %208 = arith.mulf %207, %206 : vector<8x32xf32>
    %cst_72 = arith.constant 1.000000e+00 : f32
    %209 = vector.broadcast %cst_72 : f32 to vector<8x32xf32>
    %210 = arith.subf %208, %209 : vector<8x32xf32>
    %211 = vector.extract_strided_slice %203 {offsets = [0, 96], sizes = [8, 32], strides = [1, 1]} : vector<8x128xf32> to vector<8x32xf32>
    %212 = arith.mulf %205, %170 : vector<8x32xf32>
    %213 = arith.mulf %204, %210 : vector<8x32xf32>
    %214 = arith.addf %212, %213 : vector<8x32xf32>
    %215 = math.tanh %214 : vector<8x32xf32>
    %216 = arith.mulf %211, %215 : vector<8x32xf32>
    %c5 = arith.constant 5 : index
    %c0_73 = arith.constant 0 : index
    %c0_74 = arith.constant 0 : index
    %217 = vector.load %arg13[%c5, %c0_73, %c0_74] : memref<8x8x128xf32, #tpu.memory_space<vmem>>, vector<1x8x128xf32>
    %218 = vector.shape_cast %217 : vector<1x8x128xf32> to vector<8x128xf32>
    %cst_75 = arith.constant dense<0.000000e+00> : vector<8x128xf32>
    %219 = tpu.matmul %194, %8, %cst_75 {dimension_numbers = #tpu.dot_dimension_numbers<[1], [0], [0], [1], [0, 0, 1, 1], [], []>} : vector<8x32xf32>, vector<32x128xf32>, vector<8x128xf32> -> vector<8x128xf32>
    %220 = arith.addf %218, %219 : vector<8x128xf32>
    %221 = arith.negf %220 : vector<8x128xf32>
    %222 = math.exp %221 : vector<8x128xf32>
    %cst_76 = arith.constant 1.000000e+00 : f32
    %223 = vector.broadcast %cst_76 : f32 to vector<8x128xf32>
    %224 = arith.addf %223, %222 : vector<8x128xf32>
    %225 = arith.divf %223, %224 : vector<8x128xf32>
    %226 = vector.extract_strided_slice %225 {offsets = [0, 0], sizes = [8, 32], strides = [1, 1]} : vector<8x128xf32> to vector<8x32xf32>
    %227 = vector.extract_strided_slice %225 {offsets = [0, 32], sizes = [8, 32], strides = [1, 1]} : vector<8x128xf32> to vector<8x32xf32>
    %228 = vector.extract_strided_slice %225 {offsets = [0, 64], sizes = [8, 32], strides = [1, 1]} : vector<8x128xf32> to vector<8x32xf32>
    %cst_77 = arith.constant 2.000000e+00 : f32
    %229 = vector.broadcast %cst_77 : f32 to vector<8x32xf32>
    %230 = arith.mulf %229, %228 : vector<8x32xf32>
    %cst_78 = arith.constant 1.000000e+00 : f32
    %231 = vector.broadcast %cst_78 : f32 to vector<8x32xf32>
    %232 = arith.subf %230, %231 : vector<8x32xf32>
    %233 = vector.extract_strided_slice %225 {offsets = [0, 96], sizes = [8, 32], strides = [1, 1]} : vector<8x128xf32> to vector<8x32xf32>
    %234 = arith.mulf %227, %192 : vector<8x32xf32>
    %235 = arith.mulf %226, %232 : vector<8x32xf32>
    %236 = arith.addf %234, %235 : vector<8x32xf32>
    %237 = math.tanh %236 : vector<8x32xf32>
    %238 = arith.mulf %233, %237 : vector<8x32xf32>
    %239 = tpu.concatenate %194, %216 in 1 : vector<8x32xf32>, vector<8x32xf32> -> vector<8x64xf32>
    %cst_79 = arith.constant dense<0.000000e+00> : vector<8x128xf32>
    %240 = tpu.matmul %239, %9, %cst_79 {dimension_numbers = #tpu.dot_dimension_numbers<[1], [0], [0], [1], [0, 0, 1, 1], [], []>} : vector<8x64xf32>, vector<64x128xf32>, vector<8x128xf32> -> vector<8x128xf32>
    %241 = vector.broadcast %10 : vector<1x128xf32> to vector<8x128xf32>
    %242 = arith.addf %240, %241 : vector<8x128xf32>
    %243 = arith.negf %242 : vector<8x128xf32>
    %244 = math.exp %243 : vector<8x128xf32>
    %cst_80 = arith.constant 1.000000e+00 : f32
    %245 = vector.broadcast %cst_80 : f32 to vector<8x128xf32>
    %246 = arith.addf %245, %244 : vector<8x128xf32>
    %247 = arith.divf %245, %246 : vector<8x128xf32>
    %248 = vector.extract_strided_slice %247 {offsets = [0, 0], sizes = [8, 32], strides = [1, 1]} : vector<8x128xf32> to vector<8x32xf32>
    %249 = vector.extract_strided_slice %247 {offsets = [0, 32], sizes = [8, 32], strides = [1, 1]} : vector<8x128xf32> to vector<8x32xf32>
    %250 = vector.extract_strided_slice %247 {offsets = [0, 64], sizes = [8, 32], strides = [1, 1]} : vector<8x128xf32> to vector<8x32xf32>
    %cst_81 = arith.constant 2.000000e+00 : f32
    %251 = vector.broadcast %cst_81 : f32 to vector<8x32xf32>
    %252 = arith.mulf %251, %250 : vector<8x32xf32>
    %cst_82 = arith.constant 1.000000e+00 : f32
    %253 = vector.broadcast %cst_82 : f32 to vector<8x32xf32>
    %254 = arith.subf %252, %253 : vector<8x32xf32>
    %255 = vector.extract_strided_slice %247 {offsets = [0, 96], sizes = [8, 32], strides = [1, 1]} : vector<8x128xf32> to vector<8x32xf32>
    %256 = arith.mulf %249, %214 : vector<8x32xf32>
    %257 = arith.mulf %248, %254 : vector<8x32xf32>
    %258 = arith.addf %256, %257 : vector<8x32xf32>
    %259 = math.tanh %258 : vector<8x32xf32>
    %260 = arith.mulf %255, %259 : vector<8x32xf32>
    %c6 = arith.constant 6 : index
    %c0_83 = arith.constant 0 : index
    %c0_84 = arith.constant 0 : index
    %261 = vector.load %arg13[%c6, %c0_83, %c0_84] : memref<8x8x128xf32, #tpu.memory_space<vmem>>, vector<1x8x128xf32>
    %262 = vector.shape_cast %261 : vector<1x8x128xf32> to vector<8x128xf32>
    %cst_85 = arith.constant dense<0.000000e+00> : vector<8x128xf32>
    %263 = tpu.matmul %238, %8, %cst_85 {dimension_numbers = #tpu.dot_dimension_numbers<[1], [0], [0], [1], [0, 0, 1, 1], [], []>} : vector<8x32xf32>, vector<32x128xf32>, vector<8x128xf32> -> vector<8x128xf32>
    %264 = arith.addf %262, %263 : vector<8x128xf32>
    %265 = arith.negf %264 : vector<8x128xf32>
    %266 = math.exp %265 : vector<8x128xf32>
    %cst_86 = arith.constant 1.000000e+00 : f32
    %267 = vector.broadcast %cst_86 : f32 to vector<8x128xf32>
    %268 = arith.addf %267, %266 : vector<8x128xf32>
    %269 = arith.divf %267, %268 : vector<8x128xf32>
    %270 = vector.extract_strided_slice %269 {offsets = [0, 0], sizes = [8, 32], strides = [1, 1]} : vector<8x128xf32> to vector<8x32xf32>
    %271 = vector.extract_strided_slice %269 {offsets = [0, 32], sizes = [8, 32], strides = [1, 1]} : vector<8x128xf32> to vector<8x32xf32>
    %272 = vector.extract_strided_slice %269 {offsets = [0, 64], sizes = [8, 32], strides = [1, 1]} : vector<8x128xf32> to vector<8x32xf32>
    %cst_87 = arith.constant 2.000000e+00 : f32
    %273 = vector.broadcast %cst_87 : f32 to vector<8x32xf32>
    %274 = arith.mulf %273, %272 : vector<8x32xf32>
    %cst_88 = arith.constant 1.000000e+00 : f32
    %275 = vector.broadcast %cst_88 : f32 to vector<8x32xf32>
    %276 = arith.subf %274, %275 : vector<8x32xf32>
    %277 = vector.extract_strided_slice %269 {offsets = [0, 96], sizes = [8, 32], strides = [1, 1]} : vector<8x128xf32> to vector<8x32xf32>
    %278 = arith.mulf %271, %236 : vector<8x32xf32>
    %279 = arith.mulf %270, %276 : vector<8x32xf32>
    %280 = arith.addf %278, %279 : vector<8x32xf32>
    %281 = math.tanh %280 : vector<8x32xf32>
    %282 = arith.mulf %277, %281 : vector<8x32xf32>
    %283 = tpu.concatenate %238, %260 in 1 : vector<8x32xf32>, vector<8x32xf32> -> vector<8x64xf32>
    %cst_89 = arith.constant dense<0.000000e+00> : vector<8x128xf32>
    %284 = tpu.matmul %283, %9, %cst_89 {dimension_numbers = #tpu.dot_dimension_numbers<[1], [0], [0], [1], [0, 0, 1, 1], [], []>} : vector<8x64xf32>, vector<64x128xf32>, vector<8x128xf32> -> vector<8x128xf32>
    %285 = vector.broadcast %10 : vector<1x128xf32> to vector<8x128xf32>
    %286 = arith.addf %284, %285 : vector<8x128xf32>
    %287 = arith.negf %286 : vector<8x128xf32>
    %288 = math.exp %287 : vector<8x128xf32>
    %cst_90 = arith.constant 1.000000e+00 : f32
    %289 = vector.broadcast %cst_90 : f32 to vector<8x128xf32>
    %290 = arith.addf %289, %288 : vector<8x128xf32>
    %291 = arith.divf %289, %290 : vector<8x128xf32>
    %292 = vector.extract_strided_slice %291 {offsets = [0, 0], sizes = [8, 32], strides = [1, 1]} : vector<8x128xf32> to vector<8x32xf32>
    %293 = vector.extract_strided_slice %291 {offsets = [0, 32], sizes = [8, 32], strides = [1, 1]} : vector<8x128xf32> to vector<8x32xf32>
    %294 = vector.extract_strided_slice %291 {offsets = [0, 64], sizes = [8, 32], strides = [1, 1]} : vector<8x128xf32> to vector<8x32xf32>
    %cst_91 = arith.constant 2.000000e+00 : f32
    %295 = vector.broadcast %cst_91 : f32 to vector<8x32xf32>
    %296 = arith.mulf %295, %294 : vector<8x32xf32>
    %cst_92 = arith.constant 1.000000e+00 : f32
    %297 = vector.broadcast %cst_92 : f32 to vector<8x32xf32>
    %298 = arith.subf %296, %297 : vector<8x32xf32>
    %299 = vector.extract_strided_slice %291 {offsets = [0, 96], sizes = [8, 32], strides = [1, 1]} : vector<8x128xf32> to vector<8x32xf32>
    %300 = arith.mulf %293, %258 : vector<8x32xf32>
    %301 = arith.mulf %292, %298 : vector<8x32xf32>
    %302 = arith.addf %300, %301 : vector<8x32xf32>
    %303 = math.tanh %302 : vector<8x32xf32>
    %304 = arith.mulf %299, %303 : vector<8x32xf32>
    %c7 = arith.constant 7 : index
    %c0_93 = arith.constant 0 : index
    %c0_94 = arith.constant 0 : index
    %305 = vector.load %arg13[%c7, %c0_93, %c0_94] : memref<8x8x128xf32, #tpu.memory_space<vmem>>, vector<1x8x128xf32>
    %306 = vector.shape_cast %305 : vector<1x8x128xf32> to vector<8x128xf32>
    %cst_95 = arith.constant dense<0.000000e+00> : vector<8x128xf32>
    %307 = tpu.matmul %282, %8, %cst_95 {dimension_numbers = #tpu.dot_dimension_numbers<[1], [0], [0], [1], [0, 0, 1, 1], [], []>} : vector<8x32xf32>, vector<32x128xf32>, vector<8x128xf32> -> vector<8x128xf32>
    %308 = arith.addf %306, %307 : vector<8x128xf32>
    %309 = arith.negf %308 : vector<8x128xf32>
    %310 = math.exp %309 : vector<8x128xf32>
    %cst_96 = arith.constant 1.000000e+00 : f32
    %311 = vector.broadcast %cst_96 : f32 to vector<8x128xf32>
    %312 = arith.addf %311, %310 : vector<8x128xf32>
    %313 = arith.divf %311, %312 : vector<8x128xf32>
    %314 = vector.extract_strided_slice %313 {offsets = [0, 0], sizes = [8, 32], strides = [1, 1]} : vector<8x128xf32> to vector<8x32xf32>
    %315 = vector.extract_strided_slice %313 {offsets = [0, 32], sizes = [8, 32], strides = [1, 1]} : vector<8x128xf32> to vector<8x32xf32>
    %316 = vector.extract_strided_slice %313 {offsets = [0, 64], sizes = [8, 32], strides = [1, 1]} : vector<8x128xf32> to vector<8x32xf32>
    %cst_97 = arith.constant 2.000000e+00 : f32
    %317 = vector.broadcast %cst_97 : f32 to vector<8x32xf32>
    %318 = arith.mulf %317, %316 : vector<8x32xf32>
    %cst_98 = arith.constant 1.000000e+00 : f32
    %319 = vector.broadcast %cst_98 : f32 to vector<8x32xf32>
    %320 = arith.subf %318, %319 : vector<8x32xf32>
    %321 = vector.extract_strided_slice %313 {offsets = [0, 96], sizes = [8, 32], strides = [1, 1]} : vector<8x128xf32> to vector<8x32xf32>
    %322 = arith.mulf %315, %280 : vector<8x32xf32>
    %323 = arith.mulf %314, %320 : vector<8x32xf32>
    %324 = arith.addf %322, %323 : vector<8x32xf32>
    %325 = math.tanh %324 : vector<8x32xf32>
    %326 = arith.mulf %321, %325 : vector<8x32xf32>
    %327 = tpu.concatenate %282, %304 in 1 : vector<8x32xf32>, vector<8x32xf32> -> vector<8x64xf32>
    %cst_99 = arith.constant dense<0.000000e+00> : vector<8x128xf32>
    %328 = tpu.matmul %327, %9, %cst_99 {dimension_numbers = #tpu.dot_dimension_numbers<[1], [0], [0], [1], [0, 0, 1, 1], [], []>} : vector<8x64xf32>, vector<64x128xf32>, vector<8x128xf32> -> vector<8x128xf32>
    %329 = vector.broadcast %10 : vector<1x128xf32> to vector<8x128xf32>
    %330 = arith.addf %328, %329 : vector<8x128xf32>
    %331 = arith.negf %330 : vector<8x128xf32>
    %332 = math.exp %331 : vector<8x128xf32>
    %cst_100 = arith.constant 1.000000e+00 : f32
    %333 = vector.broadcast %cst_100 : f32 to vector<8x128xf32>
    %334 = arith.addf %333, %332 : vector<8x128xf32>
    %335 = arith.divf %333, %334 : vector<8x128xf32>
    %336 = vector.extract_strided_slice %335 {offsets = [0, 0], sizes = [8, 32], strides = [1, 1]} : vector<8x128xf32> to vector<8x32xf32>
    %337 = vector.extract_strided_slice %335 {offsets = [0, 32], sizes = [8, 32], strides = [1, 1]} : vector<8x128xf32> to vector<8x32xf32>
    %338 = vector.extract_strided_slice %335 {offsets = [0, 64], sizes = [8, 32], strides = [1, 1]} : vector<8x128xf32> to vector<8x32xf32>
    %cst_101 = arith.constant 2.000000e+00 : f32
    %339 = vector.broadcast %cst_101 : f32 to vector<8x32xf32>
    %340 = arith.mulf %339, %338 : vector<8x32xf32>
    %cst_102 = arith.constant 1.000000e+00 : f32
    %341 = vector.broadcast %cst_102 : f32 to vector<8x32xf32>
    %342 = arith.subf %340, %341 : vector<8x32xf32>
    %343 = vector.extract_strided_slice %335 {offsets = [0, 96], sizes = [8, 32], strides = [1, 1]} : vector<8x128xf32> to vector<8x32xf32>
    %344 = arith.mulf %337, %302 : vector<8x32xf32>
    %345 = arith.mulf %336, %342 : vector<8x32xf32>
    %346 = arith.addf %344, %345 : vector<8x32xf32>
    %347 = math.tanh %346 : vector<8x32xf32>
    %348 = arith.mulf %343, %347 : vector<8x32xf32>
    %349 = tpu.concatenate %326, %348 in 1 : vector<8x32xf32>, vector<8x32xf32> -> vector<8x64xf32>
    %cst_103 = arith.constant dense<0.000000e+00> : vector<8x128xf32>
    %350 = tpu.matmul %349, %9, %cst_103 {dimension_numbers = #tpu.dot_dimension_numbers<[1], [0], [0], [1], [0, 0, 1, 1], [], []>} : vector<8x64xf32>, vector<64x128xf32>, vector<8x128xf32> -> vector<8x128xf32>
    %351 = vector.broadcast %10 : vector<1x128xf32> to vector<8x128xf32>
    %352 = arith.addf %350, %351 : vector<8x128xf32>
    %353 = arith.negf %352 : vector<8x128xf32>
    %354 = math.exp %353 : vector<8x128xf32>
    %cst_104 = arith.constant 1.000000e+00 : f32
    %355 = vector.broadcast %cst_104 : f32 to vector<8x128xf32>
    %356 = arith.addf %355, %354 : vector<8x128xf32>
    %357 = arith.divf %355, %356 : vector<8x128xf32>
    %358 = vector.extract_strided_slice %357 {offsets = [0, 0], sizes = [8, 32], strides = [1, 1]} : vector<8x128xf32> to vector<8x32xf32>
    %359 = vector.extract_strided_slice %357 {offsets = [0, 32], sizes = [8, 32], strides = [1, 1]} : vector<8x128xf32> to vector<8x32xf32>
    %360 = vector.extract_strided_slice %357 {offsets = [0, 64], sizes = [8, 32], strides = [1, 1]} : vector<8x128xf32> to vector<8x32xf32>
    %cst_105 = arith.constant 2.000000e+00 : f32
    %361 = vector.broadcast %cst_105 : f32 to vector<8x32xf32>
    %362 = arith.mulf %361, %360 : vector<8x32xf32>
    %cst_106 = arith.constant 1.000000e+00 : f32
    %363 = vector.broadcast %cst_106 : f32 to vector<8x32xf32>
    %364 = arith.subf %362, %363 : vector<8x32xf32>
    %365 = vector.extract_strided_slice %357 {offsets = [0, 96], sizes = [8, 32], strides = [1, 1]} : vector<8x128xf32> to vector<8x32xf32>
    %366 = arith.mulf %359, %346 : vector<8x32xf32>
    %367 = arith.mulf %358, %364 : vector<8x32xf32>
    %368 = arith.addf %366, %367 : vector<8x32xf32>
    %369 = math.tanh %368 : vector<8x32xf32>
    %370 = arith.mulf %365, %369 : vector<8x32xf32>
    %c0_107 = arith.constant 0 : index
    %c0_108 = arith.constant 0 : index
    %c0_109 = arith.constant 0 : index
    %371 = vector.load %arg11[%c0_107, %c0_108, %c0_109] : memref<2x8x32xf32, #tpu.memory_space<vmem>>, vector<1x8x32xf32>
    %372 = vector.shape_cast %371 : vector<1x8x32xf32> to vector<8x32xf32>
    %373 = vector.shape_cast %326 : vector<8x32xf32> to vector<1x8x32xf32>
    tpu.vector_store %arg11[%c0_107, %c0_108, %c0_109], %373 {strides = array<i32>} : memref<2x8x32xf32, #tpu.memory_space<vmem>>, vector<1x8x32xf32>,
    %c0_110 = arith.constant 0 : index
    %c0_111 = arith.constant 0 : index
    %c0_112 = arith.constant 0 : index
    %374 = vector.load %arg12[%c0_110, %c0_111, %c0_112] : memref<2x8x32xf32, #tpu.memory_space<vmem>>, vector<1x8x32xf32>
    %375 = vector.shape_cast %374 : vector<1x8x32xf32> to vector<8x32xf32>
    %376 = vector.shape_cast %324 : vector<8x32xf32> to vector<1x8x32xf32>
    tpu.vector_store %arg12[%c0_110, %c0_111, %c0_112], %376 {strides = array<i32>} : memref<2x8x32xf32, #tpu.memory_space<vmem>>, vector<1x8x32xf32>,
    %c1_113 = arith.constant 1 : index
    %c0_114 = arith.constant 0 : index
    %c0_115 = arith.constant 0 : index
    %377 = vector.load %arg11[%c1_113, %c0_114, %c0_115] : memref<2x8x32xf32, #tpu.memory_space<vmem>>, vector<1x8x32xf32>
    %378 = vector.shape_cast %377 : vector<1x8x32xf32> to vector<8x32xf32>
    %379 = vector.shape_cast %370 : vector<8x32xf32> to vector<1x8x32xf32>
    tpu.vector_store %arg11[%c1_113, %c0_114, %c0_115], %379 {strides = array<i32>} : memref<2x8x32xf32, #tpu.memory_space<vmem>>, vector<1x8x32xf32>,
    %c1_116 = arith.constant 1 : index
    %c0_117 = arith.constant 0 : index
    %c0_118 = arith.constant 0 : index
    %380 = vector.load %arg12[%c1_116, %c0_117, %c0_118] : memref<2x8x32xf32, #tpu.memory_space<vmem>>, vector<1x8x32xf32>
    %381 = vector.shape_cast %380 : vector<1x8x32xf32> to vector<8x32xf32>
    %382 = vector.shape_cast %368 : vector<8x32xf32> to vector<1x8x32xf32>
    tpu.vector_store %arg12[%c1_116, %c0_117, %c0_118], %382 {strides = array<i32>} : memref<2x8x32xf32, #tpu.memory_space<vmem>>, vector<1x8x32xf32>,
    %383 = arith.mulf %84, %84 : vector<8x32xf32>
    %cst_119 = arith.constant dense<0.000000e+00> : vector<8xf32>
    %384 = vector.multi_reduction <add>, %383, %cst_119 [1] : vector<8x32xf32> to vector<8xf32>
    %385 = vector.shape_cast %384 : vector<8xf32> to vector<8x1xf32>
    %cst_120 = arith.constant 1.000000e-24 : f32
    %386 = vector.broadcast %cst_120 : f32 to vector<8x1xf32>
    %387 = arith.maximumf %385, %386 : vector<8x1xf32>
    %388 = math.rsqrt %387 : vector<8x1xf32>
    %389 = vector.broadcast %388 : vector<8x1xf32> to vector<8x32xf32>
    %390 = arith.mulf %84, %389 : vector<8x32xf32>
    %c0_121 = arith.constant 0 : index
    %c0_122 = arith.constant 0 : index
    %391 = vector.load %arg8[%c0_121, %c0_122] : memref<32x3xf32, #tpu.memory_space<vmem>>, vector<32x3xf32>
    %cst_123 = arith.constant dense<0.000000e+00> : vector<8x3xf32>
    %392 = tpu.matmul %390, %391, %cst_123 {dimension_numbers = #tpu.dot_dimension_numbers<[1], [0], [0], [1], [0, 0, 1, 1], [], []>} : vector<8x32xf32>, vector<32x3xf32>, vector<8x3xf32> -> vector<8x3xf32>
    %c0_124 = arith.constant 0 : index
    %c0_125 = arith.constant 0 : index
    %393 = vector.load %arg9[%c0_124, %c0_125] : memref<1x3xf32, #tpu.memory_space<vmem>>, vector<1x3xf32>
    %394 = vector.broadcast %393 : vector<1x3xf32> to vector<8x3xf32>
    %395 = arith.addf %392, %394 : vector<8x3xf32>
    %c0_126 = arith.constant 0 : index
    %c0_127 = arith.constant 0 : index
    %396 = vector.load %arg10[%c0_126, %c0_127] : memref<8x3xf32, #tpu.memory_space<vmem>>, vector<8x3xf32>
    tpu.vector_store %arg10[%c0_126, %c0_127], %395 {strides = array<i32>} : memref<8x3xf32, #tpu.memory_space<vmem>>, vector<8x3xf32>,
    return
  }
}

</mosaic_0001>

<llo_original>
// kernel: _lstm_forward.1
$region0: #{_lstm_forward.1}
  #allocation0 [shape = 'u32[]', space=smem, size = 0x4, offset = 0x4, fixed_abs, tag = 'smem constant byte address 0x4 - core index']
  #allocation1 [shape = 'u32[144,128]{1,0:T(1,128)}', space=vmem, size = 0x12000, scoped, tag = 'internal scratch']
  #allocation2 [shape = 'f32[8,8,128]{2,1,0:T(8,128)}', space=vmem, size = 0x8000, scoped, tag = 'scratch operand']
  %s0 = inlined_call_operand.vmem [shape: f32[64,4], index: 0, kind: input, shape index: {}]
  %s1 = inlined_call_operand.vmem [shape: f32[4,128], index: 1, kind: input, shape index: {}]
  %s2 = inlined_call_operand.vmem [shape: f32[32,128], index: 2, kind: input, shape index: {}]
  %s3 = inlined_call_operand.vmem [shape: f32[1,128], index: 3, kind: input, shape index: {}]
  %s4 = inlined_call_operand.vmem [shape: f32[64,128], index: 4, kind: input, shape index: {}]
  %s5 = inlined_call_operand.vmem [shape: f32[1,128], index: 5, kind: input, shape index: {}]
  %s6 = inlined_call_operand.vmem [shape: f32[2,8,32], index: 6, kind: input, shape index: {}]
  %s7 = inlined_call_operand.vmem [shape: f32[2,8,32], index: 7, kind: input, shape index: {}]
  %s8 = inlined_call_operand.vmem [shape: f32[32,3], index: 8, kind: input, shape index: {}]
  %s9 = inlined_call_operand.vmem [shape: f32[1,3], index: 9, kind: input, shape index: {}]
  %s10 = inlined_call_operand.vmem [shape: f32[8,3], index: 10, kind: output, shape index: {0}]
  %s11 = inlined_call_operand.vmem [shape: f32[2,8,32], index: 11, kind: output, shape index: {1}]
  %s12 = inlined_call_operand.vmem [shape: f32[2,8,32], index: 12, kind: output, shape index: {2}]
  %13 = xla_tuple %s10, %s11, %s12
  %s14 = sld [smem:[#allocation0]]
  $region66: #{_lstm_forward.1} parent=0
    _
  %s16 = ssub.s32 1, %s14
  %s17 = scalar_select 0, %s16, %s14
  // Predicated region
  $region2: #{_lstm_forward.1} parent=0 // pred_check
    _
  $region3: #{_lstm_forward.1} parent=0 // pred_check_branch
    %19 = sbr.rel (0) target = $region5
  $region4: #{_lstm_forward.1} parent=0 // pred_region
    _
  $region5: #{_lstm_forward.1} parent=0 // pred_fallthru
    _
  // Predicated region
  $region6: #{_lstm_forward.1} parent=0 // pred_check
    _
  $region7: #{_lstm_forward.1} parent=0 // pred_check_branch
    %21 = sbr.rel (0) target = $region9
  $region8: #{_lstm_forward.1} parent=0 // pred_region
    _
  $region9: #{_lstm_forward.1} parent=0 // pred_fallthru
    _
  // Predicated region
  $region10: #{_lstm_forward.1} parent=0 // pred_check
    _
  $region11: #{_lstm_forward.1} parent=0 // pred_check_branch
    %23 = sbr.rel (0) target = $region13
  $region12: #{_lstm_forward.1} parent=0 // pred_region
    _
  $region13: #{_lstm_forward.1} parent=0 // pred_fallthru
    _
  // Predicated region
  $region14: #{_lstm_forward.1} parent=0 // pred_check
    _
  $region15: #{_lstm_forward.1} parent=0 // pred_check_branch
    %25 = sbr.rel (0) target = $region17
  $region16: #{_lstm_forward.1} parent=0 // pred_region
    _
  $region17: #{_lstm_forward.1} parent=0 // pred_fallthru
    _
  // Predicated region
  $region18: #{_lstm_forward.1} parent=0 // pred_check
    _
  $region19: #{_lstm_forward.1} parent=0 // pred_check_branch
    %27 = sbr.rel (0) target = $region21
  $region20: #{_lstm_forward.1} parent=0 // pred_region
    _
  $region21: #{_lstm_forward.1} parent=0 // pred_fallthru
    _
  // Predicated region
  $region22: #{_lstm_forward.1} parent=0 // pred_check
    _
  $region23: #{_lstm_forward.1} parent=0 // pred_check_branch
    %29 = sbr.rel (0) target = $region25
  $region24: #{_lstm_forward.1} parent=0 // pred_region
    _
  $region25: #{_lstm_forward.1} parent=0 // pred_fallthru
    _
  // Predicated region
  $region26: #{_lstm_forward.1} parent=0 // pred_check
    _
  $region27: #{_lstm_forward.1} parent=0 // pred_check_branch
    %31 = sbr.rel (0) target = $region29
  $region28: #{_lstm_forward.1} parent=0 // pred_region
    _
  $region29: #{_lstm_forward.1} parent=0 // pred_fallthru
    _
  // Predicated region
  $region30: #{_lstm_forward.1} parent=0 // pred_check
    _
  $region31: #{_lstm_forward.1} parent=0 // pred_check_branch
    %33 = sbr.rel (0) target = $region33
  $region32: #{_lstm_forward.1} parent=0 // pred_region
    _
  $region33: #{_lstm_forward.1} parent=0 // pred_fallthru
    _
  // Predicated region
  $region34: #{_lstm_forward.1} parent=0 // pred_check
    _
  $region35: #{_lstm_forward.1} parent=0 // pred_check_branch
    %35 = sbr.rel (0) target = $region37
  $region36: #{_lstm_forward.1} parent=0 // pred_region
    _
  $region37: #{_lstm_forward.1} parent=0 // pred_fallthru
    _
  // Predicated region
  $region38: #{_lstm_forward.1} parent=0 // pred_check
    _
  $region39: #{_lstm_forward.1} parent=0 // pred_check_branch
    %37 = sbr.rel (0) target = $region41
  $region40: #{_lstm_forward.1} parent=0 // pred_region
    _
  $region41: #{_lstm_forward.1} parent=0 // pred_fallthru
    _
  %v38 = vld [vmem:[%s0] sm:$0xff]
  %v39 = vld [vmem:[%s0 + $0x8] sm:$0xff]
  %v40 = vld [vmem:[%s0 + $0x10] sm:$0xff]
  %v41 = vld [vmem:[%s0 + $0x18] sm:$0xff]
  %v42 = vld [vmem:[%s0 + $0x20] sm:$0xff]
  %v43 = vld [vmem:[%s0 + $0x28] sm:$0xff]
  %v44 = vld [vmem:[%s0 + $0x30] sm:$0xff]
  %v45 = vld [vmem:[%s0 + $0x38] sm:$0xff]
  %v46 = vld [vmem:[%s1] sm:$0xf]
  %v47 = vld [vmem:[%s3] sm:$0x1]
  %v49 = vlaneseq
  %v50 = vshrl.u32 %v49, 7
  %v51 = vsub.s32 0, %v50
  %v52 = vrot.slane %v47, %v51
  %vm54 = vcmask 31744
  %v56 = vsel %vm54, %v38, 0
  %v59 = vsel %vm54, %v39, 0
  %v62 = vsel %vm54, %v40, 0
  %v65 = vsel %vm54, %v41, 0
  %v68 = vsel %vm54, %v42, 0
  %v71 = vsel %vm54, %v43, 0
  %v74 = vsel %vm54, %v44, 0
  %v77 = vsel %vm54, %v45, 0
  %vm79 = vcmask 1043456
  %v81 = vsel %vm79, %v46, 0
  %83 = vmatprep.subr.mxu0 0.0
  %84 = vmatpush1.msra.mxu0 %v81
  %85 = vmatprep.subr.mxu0 0.0
  %86 = vmatpush1.msra.mxu0 0.0
  %87 = vmatprep.subr.mxu0 0.0
  %88 = vmatpush1.msra.mxu0 0.0
  %89 = vmatprep.subr.mxu0 0.0
  %90 = vmatpush1.msra.mxu0 0.0
  %91 = vmatprep.subr.mxu0 0.0
  %92 = vmatpush1.msra.mxu0 0.0
  %93 = vmatprep.subr.mxu0 0.0
  %94 = vmatpush1.msra.mxu0 0.0
  %95 = vmatprep.subr.mxu0 0.0
  %96 = vmatpush1.msra.mxu0 0.0
  %97 = vmatprep.subr.mxu0 0.0
  %98 = vmatpush1.msra.mxu0 0.0
  %99 = vmatprep.subr.mxu0 0.0
  %100 = vmatpush1.msra.mxu0 0.0
  %101 = vmatprep.subr.mxu0 0.0
  %102 = vmatpush1.msra.mxu0 0.0
  %103 = vmatprep.subr.mxu0 0.0
  %104 = vmatpush1.msra.mxu0 0.0
  %105 = vmatprep.subr.mxu0 0.0
  %106 = vmatpush1.msra.mxu0 0.0
  %107 = vmatprep.subr.mxu0 0.0
  %108 = vmatpush1.msra.mxu0 0.0
  %109 = vmatprep.subr.mxu0 0.0
  %110 = vmatpush1.msra.mxu0 0.0
  %111 = vmatprep.subr.mxu0 0.0
  %112 = vmatpush1.msra.mxu0 0.0
  %113 = vmatprep.subr.mxu0 0.0
  %114 = vmatpush1.msra.mxu0 0.0
  %115 = vmatprep.subr.mxu0 0.0
  %116 = vmatpush1.msra.mxu0 0.0
  %117 = vmatprep.subr.mxu0 0.0
  %118 = vmatpush1.msra.mxu0 0.0
  %119 = vmatprep.subr.mxu0 0.0
  %120 = vmatpush1.msra.mxu0 0.0
  %121 = vmatprep.subr.mxu0 0.0
  %122 = vmatpush1.msra.mxu0 0.0
  %123 = vmatprep.subr.mxu0 0.0
  %124 = vmatpush1.msra.mxu0 0.0
  %125 = vmatprep.subr.mxu0 0.0
  %126 = vmatpush1.msra.mxu0 0.0
  %127 = vmatprep.subr.mxu0 0.0
  %128 = vmatpush1.msra.mxu0 0.0
  %129 = vmatprep.subr.mxu0 0.0
  %130 = vmatpush1.msra.mxu0 0.0
  %131 = vmatprep.subr.mxu0 0.0
  %132 = vmatpush1.msra.mxu0 0.0
  %133 = vmatprep.subr.mxu0 0.0
  %134 = vmatpush1.msra.mxu0 0.0
  %135 = vmatprep.subr.mxu0 0.0
  %136 = vmatpush1.msra.mxu0 0.0
  %137 = vmatprep.subr.mxu0 0.0
  %138 = vmatpush1.msra.mxu0 0.0
  %139 = vmatprep.subr.mxu0 0.0
  %140 = vmatpush1.msra.mxu0 0.0
  %141 = vmatprep.subr.mxu0 0.0
  %142 = vmatpush1.msra.mxu0 0.0
  %143 = vmatprep.subr.mxu0 0.0
  %144 = vmatpush1.msra.mxu0 0.0
  %145 = vmatprep.subr.mxu0 0.0
  %146 = vmatpush1.msra.mxu0 0.0
  %147 = vmatprep.mubr.f32.mxu0 0.0
  %148 = vmatmul.mubr.f32.gmra.mrb[0].mxu0 %v56
  %v149 = vpop.f32.mrb[0].mxu0
  %v150 = vadd.f32 %v52, %v149
  %v151 = vpop.f32.mrb[0].mxu0
  %152 = vmatprep.mubr.f32.mxu0 0.0
  %153 = vmatmul.mubr.f32.gmra.mrb[0].mxu0 %v59
  %v154 = vpop.f32.mrb[0].mxu0
  %v155 = vadd.f32 %v52, %v154
  %v156 = vpop.f32.mrb[0].mxu0
  %157 = vmatprep.mubr.f32.mxu0 0.0
  %158 = vmatmul.mubr.f32.gmra.mrb[0].mxu0 %v62
  %v159 = vpop.f32.mrb[0].mxu0
  %v160 = vadd.f32 %v52, %v159
  %v161 = vpop.f32.mrb[0].mxu0
  %162 = vmatprep.mubr.f32.mxu0 0.0
  %163 = vmatmul.mubr.f32.gmra.mrb[0].mxu0 %v65
  %v164 = vpop.f32.mrb[0].mxu0
  %v165 = vadd.f32 %v52, %v164
  %v166 = vpop.f32.mrb[0].mxu0
  %167 = vmatprep.mubr.f32.mxu0 0.0
  %168 = vmatmul.mubr.f32.gmra.mrb[0].mxu0 %v68
  %v169 = vpop.f32.mrb[0].mxu0
  %v170 = vadd.f32 %v52, %v169
  %v171 = vpop.f32.mrb[0].mxu0
  %172 = vmatprep.mubr.f32.mxu0 0.0
  %173 = vmatmul.mubr.f32.gmra.mrb[0].mxu0 %v71
  %v174 = vpop.f32.mrb[0].mxu0
  %v175 = vadd.f32 %v52, %v174
  %v176 = vpop.f32.mrb[0].mxu0
  %177 = vmatprep.mubr.f32.mxu0 0.0
  %178 = vmatmul.mubr.f32.gmra.mrb[0].mxu0 %v74
  %v179 = vpop.f32.mrb[0].mxu0
  %v180 = vadd.f32 %v52, %v179
  %v181 = vpop.f32.mrb[0].mxu0
  %182 = vmatprep.mubr.f32.mxu0 0.0
  %183 = vmatmul.mubr.f32.gmra.mrb[0].mxu0 %v77
  %v184 = vpop.f32.mrb[0].mxu0
  %v185 = vadd.f32 %v52, %v184
  %v186 = vpop.f32.mrb[0].mxu0
  %187 = vdwg.mxu0
  %188 = vst [vmem:[#allocation2] sm:$0xff] %v150
  %189 = vst [vmem:[#allocation2 + $0x8] sm:$0xff] %v155
  %190 = vst [vmem:[#allocation2 + $0x10] sm:$0xff] %v160
  %191 = vst [vmem:[#allocation2 + $0x18] sm:$0xff] %v165
  %192 = vst [vmem:[#allocation2 + $0x20] sm:$0xff] %v170
  %193 = vst [vmem:[#allocation2 + $0x28] sm:$0xff] %v175
  %194 = vst [vmem:[#allocation2 + $0x30] sm:$0xff] %v180
  %195 = vst [vmem:[#allocation2 + $0x38] sm:$0xff] %v185
  %v196 = vld [vmem:[%s2] sm:$0xff]
  %v197 = vld [vmem:[%s2 + $0x8] sm:$0xff]
  %v198 = vld [vmem:[%s2 + $0x10] sm:$0xff]
  %v199 = vld [vmem:[%s2 + $0x18] sm:$0xff]
  %v200 = vld [vmem:[%s4] sm:$0xff]
  %v201 = vld [vmem:[%s4 + $0x8] sm:$0xff]
  %v202 = vld [vmem:[%s4 + $0x10] sm:$0xff]
  %v203 = vld [vmem:[%s4 + $0x18] sm:$0xff]
  %v204 = vld [vmem:[%s4 + $0x20] sm:$0xff]
  %v205 = vld [vmem:[%s4 + $0x28] sm:$0xff]
  %v206 = vld [vmem:[%s4 + $0x30] sm:$0xff]
  %v207 = vld [vmem:[%s4 + $0x38] sm:$0xff]
  %v208 = vld [vmem:[%s5] sm:$0x1]
  %v209 = vld [vmem:[%s6] sm:$0xff]
  %s210 = scalar_lea.vmem %s6, 8
  %v211 = vld [vmem:[%s210] sm:$0xff]
  %v212 = vld [vmem:[%s7] sm:$0xff]
  %s213 = scalar_lea.vmem %s7, 8
  %v214 = vld [vmem:[%s213] sm:$0xff]
  %v215 = vld [vmem:[#allocation2] sm:$0xff]
  %vm216 = vcmask 261120
  %v218 = vsel %vm216, %v209, 0
  %220 = vmatprep.subr.mxu0 0.0
  %221 = vmatpush1.msra.mxu0 %v196
  %222 = vmatprep.subr.mxu0 0.0
  %223 = vmatpush1.msra.mxu0 %v197
  %224 = vmatprep.subr.mxu0 0.0
  %225 = vmatpush1.msra.mxu0 %v198
  %226 = vmatprep.subr.mxu0 0.0
  %227 = vmatpush1.msra.mxu0 %v199
  %228 = vmatprep.subr.mxu0 0.0
  %229 = vmatpush1.msra.mxu0 0.0
  %230 = vmatprep.subr.mxu0 0.0
  %231 = vmatpush1.msra.mxu0 0.0
  %232 = vmatprep.subr.mxu0 0.0
  %233 = vmatpush1.msra.mxu0 0.0
  %234 = vmatprep.subr.mxu0 0.0
  %235 = vmatpush1.msra.mxu0 0.0
  %236 = vmatprep.subr.mxu0 0.0
  %237 = vmatpush1.msra.mxu0 0.0
  %238 = vmatprep.subr.mxu0 0.0
  %239 = vmatpush1.msra.mxu0 0.0
  %240 = vmatprep.subr.mxu0 0.0
  %241 = vmatpush1.msra.mxu0 0.0
  %242 = vmatprep.subr.mxu0 0.0
  %243 = vmatpush1.msra.mxu0 0.0
  %244 = vmatprep.subr.mxu0 0.0
  %245 = vmatpush1.msra.mxu0 0.0
  %246 = vmatprep.subr.mxu0 0.0
  %247 = vmatpush1.msra.mxu0 0.0
  %248 = vmatprep.subr.mxu0 0.0
  %249 = vmatpush1.msra.mxu0 0.0
  %250 = vmatprep.subr.mxu0 0.0
  %251 = vmatpush1.msra.mxu0 0.0
  %252 = vmatprep.subr.mxu0 0.0
  %253 = vmatpush1.msra.mxu0 0.0
  %254 = vmatprep.subr.mxu0 0.0
  %255 = vmatpush1.msra.mxu0 0.0
  %256 = vmatprep.subr.mxu0 0.0
  %257 = vmatpush1.msra.mxu0 0.0
  %258 = vmatprep.subr.mxu0 0.0
  %259 = vmatpush1.msra.mxu0 0.0
  %260 = vmatprep.subr.mxu0 0.0
  %261 = vmatpush1.msra.mxu0 0.0
  %262 = vmatprep.subr.mxu0 0.0
  %263 = vmatpush1.msra.mxu0 0.0
  %264 = vmatprep.subr.mxu0 0.0
  %265 = vmatpush1.msra.mxu0 0.0
  %266 = vmatprep.subr.mxu0 0.0
  %267 = vmatpush1.msra.mxu0 0.0
  %268 = vmatprep.subr.mxu0 0.0
  %269 = vmatpush1.msra.mxu0 0.0
  %270 = vmatprep.subr.mxu0 0.0
  %271 = vmatpush1.msra.mxu0 0.0
  %272 = vmatprep.subr.mxu0 0.0
  %273 = vmatpush1.msra.mxu0 0.0
  %274 = vmatprep.subr.mxu0 0.0
  %275 = vmatpush1.msra.mxu0 0.0
  %276 = vmatprep.subr.mxu0 0.0
  %277 = vmatpush1.msra.mxu0 0.0
  %278 = vmatprep.subr.mxu0 0.0
  %279 = vmatpush1.msra.mxu0 0.0
  %280 = vmatprep.subr.mxu0 0.0
  %281 = vmatpush1.msra.mxu0 0.0
  %282 = vmatprep.subr.mxu0 0.0
  %283 = vmatpush1.msra.mxu0 0.0
  %284 = vmatprep.mubr.f32.mxu0 0.0
  %285 = vmatmul.mubr.f32.gmra.mrb[0].mxu0 %v218
  %v286 = vpop.f32.mrb[0].mxu0
  %v287 = vadd.f32 0.0, %v286
  %v288 = vpop.f32.mrb[0].mxu0
  %289 = vdwg.mxu0
  %v290 = vadd.f32 %v215, %v287
  %v291 = vxor.u32 %v290, 2147483648
  %v292 = vmul.f32 %v291, 1.442695
  %v293 = vpow.pop %v292
  %v294 = vadd.f32 %v293, 1.0
  %v295 = vrcp.pop %v294
  %v296 = vmul.f32 1.0, %v295
  %v297 = vmul.f32 %v296, 2.0
  %v298 = vsub.f32 %v297, 1.0
  %300 = vrot.lane.b32.xlu0 %v212, 32
  %v301 = vpop.permute.xlu0 %300
  %v303 = vmul.f32 %v296, %v301
  %305 = vrot.lane.b32.xlu0 %v298, 64
  %v306 = vpop.permute.xlu0 %305
  %v308 = vmul.f32 %v296, %v306
  %310 = vrot.lane.b32.xlu0 %v308, 32
  %v311 = vpop.permute.xlu0 %310
  %v313 = vadd.f32 %v303, %v311
  %v314 = vtanh.pop %v313
  %316 = vrot.lane.b32.xlu0 %v314, 64
  %v317 = vpop.permute.xlu0 %316
  %v319 = vmul.f32 %v296, %v317
  %s320 = scalar_lea.vmem [#allocation2], 8
  %v321 = vld [vmem:[%s320] sm:$0xff]
  %323 = vrot.lane.b32.xlu0 %v319, 32
  %v324 = vpop.permute.xlu0 %323
  %v325 = vsel %vm216, %v324, 0
  %327 = vmatprep.subr.mxu0 0.0
  %328 = vmatpush1.msra.mxu0 %v196
  %329 = vmatprep.subr.mxu0 0.0
  %330 = vmatpush1.msra.mxu0 %v197
  %331 = vmatprep.subr.mxu0 0.0
  %332 = vmatpush1.msra.mxu0 %v198
  %333 = vmatprep.subr.mxu0 0.0
  %334 = vmatpush1.msra.mxu0 %v199
  %335 = vmatprep.subr.mxu0 0.0
  %336 = vmatpush1.msra.mxu0 0.0
  %337 = vmatprep.subr.mxu0 0.0
  %338 = vmatpush1.msra.mxu0 0.0
  %339 = vmatprep.subr.mxu0 0.0
  %340 = vmatpush1.msra.mxu0 0.0
  %341 = vmatprep.subr.mxu0 0.0
  %342 = vmatpush1.msra.mxu0 0.0
  %343 = vmatprep.subr.mxu0 0.0
  %344 = vmatpush1.msra.mxu0 0.0
  %345 = vmatprep.subr.mxu0 0.0
  %346 = vmatpush1.msra.mxu0 0.0
  %347 = vmatprep.subr.mxu0 0.0
  %348 = vmatpush1.msra.mxu0 0.0
  %349 = vmatprep.subr.mxu0 0.0
  %350 = vmatpush1.msra.mxu0 0.0
  %351 = vmatprep.subr.mxu0 0.0
  %352 = vmatpush1.msra.mxu0 0.0
  %353 = vmatprep.subr.mxu0 0.0
  %354 = vmatpush1.msra.mxu0 0.0
  %355 = vmatprep.subr.mxu0 0.0
  %356 = vmatpush1.msra.mxu0 0.0
  %357 = vmatprep.subr.mxu0 0.0
  %358 = vmatpush1.msra.mxu0 0.0
  %359 = vmatprep.subr.mxu0 0.0
  %360 = vmatpush1.msra.mxu0 0.0
  %361 = vmatprep.subr.mxu0 0.0
  %362 = vmatpush1.msra.mxu0 0.0
  %363 = vmatprep.subr.mxu0 0.0
  %364 = vmatpush1.msra.mxu0 0.0
  %365 = vmatprep.subr.mxu0 0.0
  %366 = vmatpush1.msra.mxu0 0.0
  %367 = vmatprep.subr.mxu0 0.0
  %368 = vmatpush1.msra.mxu0 0.0
  %369 = vmatprep.subr.mxu0 0.0
  %370 = vmatpush1.msra.mxu0 0.0
  %371 = vmatprep.subr.mxu0 0.0
  %372 = vmatpush1.msra.mxu0 0.0
  %373 = vmatprep.subr.mxu0 0.0
  %374 = vmatpush1.msra.mxu0 0.0
  %375 = vmatprep.subr.mxu0 0.0
  %376 = vmatpush1.msra.mxu0 0.0
  %377 = vmatprep.subr.mxu0 0.0
  %378 = vmatpush1.msra.mxu0 0.0
  %379 = vmatprep.subr.mxu0 0.0
  %380 = vmatpush1.msra.mxu0 0.0
  %381 = vmatprep.subr.mxu0 0.0
  %382 = vmatpush1.msra.mxu0 0.0
  %383 = vmatprep.subr.mxu0 0.0
  %384 = vmatpush1.msra.mxu0 0.0
  %385 = vmatprep.subr.mxu0 0.0
  %386 = vmatpush1.msra.mxu0 0.0
  %387 = vmatprep.subr.mxu0 0.0
  %388 = vmatpush1.msra.mxu0 0.0
  %389 = vmatprep.subr.mxu0 0.0
  %390 = vmatpush1.msra.mxu0 0.0
  %391 = vmatprep.mubr.f32.mxu0 0.0
  %392 = vmatmul.mubr.f32.gmra.mrb[0].mxu0 %v325
  %v393 = vpop.f32.mrb[0].mxu0
  %v394 = vadd.f32 0.0, %v393
  %v395 = vpop.f32.mrb[0].mxu0
  %396 = vdwg.mxu0
  %v397 = vadd.f32 %v321, %v394
  %v398 = vxor.u32 %v397, 2147483648
  %v399 = vmul.f32 %v398, 1.442695
  %v400 = vpow.pop %v399
  %v401 = vadd.f32 %v400, 1.0
  %v402 = vrcp.pop %v401
  %v403 = vmul.f32 1.0, %v402
  %v404 = vmul.f32 %v403, 2.0
  %v405 = vsub.f32 %v404, 1.0
  %v406 = vmul.f32 %v403, %v313
  %408 = vrot.lane.b32.xlu0 %v405, 64
  %v409 = vpop.permute.xlu0 %408
  %v411 = vmul.f32 %v403, %v409
  %413 = vrot.lane.b32.xlu0 %v411, 32
  %v414 = vpop.permute.xlu0 %413
  %v416 = vadd.f32 %v406, %v414
  %v417 = vtanh.pop %v416
  %419 = vrot.lane.b32.xlu0 %v417, 64
  %v420 = vpop.permute.xlu0 %419
  %v422 = vmul.f32 %v403, %v420
  %425 = vrot.lane.b32.xlu0 %v211, 32
  %v426 = vpop.permute.xlu0 %425
  %v428 = vsel %vm216, %v324, %v426
  %v430 = vlaneseq
  %v431 = vshrl.u32 %v430, 7
  %v432 = vsub.s32 0, %v431
  %v433 = vrot.slane %v208, %v432
  %vm435 = vcmask 523264
  %v437 = vsel %vm435, %v428, 0
  %439 = vmatprep.subr.mxu0 0.0
  %440 = vmatpush1.msra.mxu0 %v200
  %441 = vmatprep.subr.mxu0 0.0
  %442 = vmatpush1.msra.mxu0 %v201
  %443 = vmatprep.subr.mxu0 0.0
  %444 = vmatpush1.msra.mxu0 %v202
  %445 = vmatprep.subr.mxu0 0.0
  %446 = vmatpush1.msra.mxu0 %v203
  %447 = vmatprep.subr.mxu0 0.0
  %448 = vmatpush1.msra.mxu0 %v204
  %449 = vmatprep.subr.mxu0 0.0
  %450 = vmatpush1.msra.mxu0 %v205
  %451 = vmatprep.subr.mxu0 0.0
  %452 = vmatpush1.msra.mxu0 %v206
  %453 = vmatprep.subr.mxu0 0.0
  %454 = vmatpush1.msra.mxu0 %v207
  %455 = vmatprep.subr.mxu0 0.0
  %456 = vmatpush1.msra.mxu0 0.0
  %457 = vmatprep.subr.mxu0 0.0
  %458 = vmatpush1.msra.mxu0 0.0
  %459 = vmatprep.subr.mxu0 0.0
  %460 = vmatpush1.msra.mxu0 0.0
  %461 = vmatprep.subr.mxu0 0.0
  %462 = vmatpush1.msra.mxu0 0.0
  %463 = vmatprep.subr.mxu0 0.0
  %464 = vmatpush1.msra.mxu0 0.0
  %465 = vmatprep.subr.mxu0 0.0
  %466 = vmatpush1.msra.mxu0 0.0
  %467 = vmatprep.subr.mxu0 0.0
  %468 = vmatpush1.msra.mxu0 0.0
  %469 = vmatprep.subr.mxu0 0.0
  %470 = vmatpush1.msra.mxu0 0.0
  %471 = vmatprep.subr.mxu0 0.0
  %472 = vmatpush1.msra.mxu0 0.0
  %473 = vmatprep.subr.mxu0 0.0
  %474 = vmatpush1.msra.mxu0 0.0
  %475 = vmatprep.subr.mxu0 0.0
  %476 = vmatpush1.msra.mxu0 0.0
  %477 = vmatprep.subr.mxu0 0.0
  %478 = vmatpush1.msra.mxu0 0.0
  %479 = vmatprep.subr.mxu0 0.0
  %480 = vmatpush1.msra.mxu0 0.0
  %481 = vmatprep.subr.mxu0 0.0
  %482 = vmatpush1.msra.mxu0 0.0
  %483 = vmatprep.subr.mxu0 0.0
  %484 = vmatpush1.msra.mxu0 0.0
  %485 = vmatprep.subr.mxu0 0.0
  %486 = vmatpush1.msra.mxu0 0.0
  %487 = vmatprep.subr.mxu0 0.0
  %488 = vmatpush1.msra.mxu0 0.0
  %489 = vmatprep.subr.mxu0 0.0
  %490 = vmatpush1.msra.mxu0 0.0
  %491 = vmatprep.subr.mxu0 0.0
  %492 = vmatpush1.msra.mxu0 0.0
  %493 = vmatprep.subr.mxu0 0.0
  %494 = vmatpush1.msra.mxu0 0.0
  %495 = vmatprep.subr.mxu0 0.0
  %496 = vmatpush1.msra.mxu0 0.0
  %497 = vmatprep.subr.mxu0 0.0
  %498 = vmatpush1.msra.mxu0 0.0
  %499 = vmatprep.subr.mxu0 0.0
  %500 = vmatpush1.msra.mxu0 0.0
  %501 = vmatprep.subr.mxu0 0.0
  %502 = vmatpush1.msra.mxu0 0.0
  %503 = vmatprep.mubr.f32.mxu0 0.0
  %504 = vmatmul.mubr.f32.gmra.mrb[0].mxu0 %v437
  %v505 = vpop.f32.mrb[0].mxu0
  %v506 = vadd.f32 %v433, %v505
  %v507 = vpop.f32.mrb[0].mxu0
  %508 = vdwg.mxu0
  %v509 = vxor.u32 %v506, 2147483648
  %v510 = vmul.f32 %v509, 1.442695
  %v511 = vpow.pop %v510
  %v512 = vadd.f32 %v511, 1.0
  %v513 = vrcp.pop %v512
  %v514 = vmul.f32 1.0, %v513
  %v515 = vmul.f32 %v514, 2.0
  %v516 = vsub.f32 %v515, 1.0
  %518 = vrot.lane.b32.xlu0 %v214, 32
  %v519 = vpop.permute.xlu0 %518
  %v521 = vmul.f32 %v514, %v519
  %523 = vrot.lane.b32.xlu0 %v516, 64
  %v524 = vpop.permute.xlu0 %523
  %v526 = vmul.f32 %v514, %v524
  %528 = vrot.lane.b32.xlu0 %v526, 32
  %v529 = vpop.permute.xlu0 %528
  %v531 = vadd.f32 %v521, %v529
  %v532 = vtanh.pop %v531
  %534 = vrot.lane.b32.xlu0 %v532, 64
  %v535 = vpop.permute.xlu0 %534
  %v537 = vmul.f32 %v514, %v535
  %s538 = scalar_lea.vmem [#allocation2], 16
  %v539 = vld [vmem:[%s538] sm:$0xff]
  %541 = vrot.lane.b32.xlu0 %v422, 32
  %v542 = vpop.permute.xlu0 %541
  %v543 = vsel %vm216, %v542, 0
  %545 = vmatprep.subr.mxu0 0.0
  %546 = vmatpush1.msra.mxu0 %v196
  %547 = vmatprep.subr.mxu0 0.0
  %548 = vmatpush1.msra.mxu0 %v197
  %549 = vmatprep.subr.mxu0 0.0
  %550 = vmatpush1.msra.mxu0 %v198
  %551 = vmatprep.subr.mxu0 0.0
  %552 = vmatpush1.msra.mxu0 %v199
  %553 = vmatprep.subr.mxu0 0.0
  %554 = vmatpush1.msra.mxu0 0.0
  %555 = vmatprep.subr.mxu0 0.0
  %556 = vmatpush1.msra.mxu0 0.0
  %557 = vmatprep.subr.mxu0 0.0
  %558 = vmatpush1.msra.mxu0 0.0
  %559 = vmatprep.subr.mxu0 0.0
  %560 = vmatpush1.msra.mxu0 0.0
  %561 = vmatprep.subr.mxu0 0.0
  %562 = vmatpush1.msra.mxu0 0.0
  %563 = vmatprep.subr.mxu0 0.0
  %564 = vmatpush1.msra.mxu0 0.0
  %565 = vmatprep.subr.mxu0 0.0
  %566 = vmatpush1.msra.mxu0 0.0
  %567 = vmatprep.subr.mxu0 0.0
  %568 = vmatpush1.msra.mxu0 0.0
  %569 = vmatprep.subr.mxu0 0.0
  %570 = vmatpush1.msra.mxu0 0.0
  %571 = vmatprep.subr.mxu0 0.0
  %572 = vmatpush1.msra.mxu0 0.0
  %573 = vmatprep.subr.mxu0 0.0
  %574 = vmatpush1.msra.mxu0 0.0
  %575 = vmatprep.subr.mxu0 0.0
  %576 = vmatpush1.msra.mxu0 0.0
  %577 = vmatprep.subr.mxu0 0.0
  %578 = vmatpush1.msra.mxu0 0.0
  %579 = vmatprep.subr.mxu0 0.0
  %580 = vmatpush1.msra.mxu0 0.0
  %581 = vmatprep.subr.mxu0 0.0
  %582 = vmatpush1.msra.mxu0 0.0
  %583 = vmatprep.subr.mxu0 0.0
  %584 = vmatpush1.msra.mxu0 0.0
  %585 = vmatprep.subr.mxu0 0.0
  %586 = vmatpush1.msra.mxu0 0.0
  %587 = vmatprep.subr.mxu0 0.0
  %588 = vmatpush1.msra.mxu0 0.0
  %589 = vmatprep.subr.mxu0 0.0
  %590 = vmatpush1.msra.mxu0 0.0
  %591 = vmatprep.subr.mxu0 0.0
  %592 = vmatpush1.msra.mxu0 0.0
  %593 = vmatprep.subr.mxu0 0.0
  %594 = vmatpush1.msra.mxu0 0.0
  %595 = vmatprep.subr.mxu0 0.0
  %596 = vmatpush1.msra.mxu0 0.0
  %597 = vmatprep.subr.mxu0 0.0
  %598 = vmatpush1.msra.mxu0 0.0
  %599 = vmatprep.subr.mxu0 0.0
  %600 = vmatpush1.msra.mxu0 0.0
  %601 = vmatprep.subr.mxu0 0.0
  %602 = vmatpush1.msra.mxu0 0.0
  %603 = vmatprep.subr.mxu0 0.0
  %604 = vmatpush1.msra.mxu0 0.0
  %605 = vmatprep.subr.mxu0 0.0
  %606 = vmatpush1.msra.mxu0 0.0
  %607 = vmatprep.subr.mxu0 0.0
  %608 = vmatpush1.msra.mxu0 0.0
  %609 = vmatprep.mubr.f32.mxu0 0.0
  %610 = vmatmul.mubr.f32.gmra.mrb[0].mxu0 %v543
  %v611 = vpop.f32.mrb[0].mxu0
  %v612 = vadd.f32 0.0, %v611
  %v613 = vpop.f32.mrb[0].mxu0
  %614 = vdwg.mxu0
  %v615 = vadd.f32 %v539, %v612
  %v616 = vxor.u32 %v615, 2147483648
  %v617 = vmul.f32 %v616, 1.442695
  %v618 = vpow.pop %v617
  %v619 = vadd.f32 %v618, 1.0
  %v620 = vrcp.pop %v619
  %v621 = vmul.f32 1.0, %v620
  %v622 = vmul.f32 %v621, 2.0
  %v623 = vsub.f32 %v622, 1.0
  %v624 = vmul.f32 %v621, %v416
  %626 = vrot.lane.b32.xlu0 %v623, 64
  %v627 = vpop.permute.xlu0 %626
  %v629 = vmul.f32 %v621, %v627
  %631 = vrot.lane.b32.xlu0 %v629, 32
  %v632 = vpop.permute.xlu0 %631
  %v634 = vadd.f32 %v624, %v632
  %v635 = vtanh.pop %v634
  %637 = vrot.lane.b32.xlu0 %v635, 64
  %v638 = vpop.permute.xlu0 %637
  %v640 = vmul.f32 %v621, %v638
  %643 = vrot.lane.b32.xlu0 %v537, 64
  %v644 = vpop.permute.xlu0 %643
  %v646 = vsel %vm216, %v542, %v644
  %v648 = vsel %vm435, %v646, 0
  %650 = vmatprep.subr.mxu0 0.0
  %651 = vmatpush1.msra.mxu0 %v200
  %652 = vmatprep.subr.mxu0 0.0
  %653 = vmatpush1.msra.mxu0 %v201
  %654 = vmatprep.subr.mxu0 0.0
  %655 = vmatpush1.msra.mxu0 %v202
  %656 = vmatprep.subr.mxu0 0.0
  %657 = vmatpush1.msra.mxu0 %v203
  %658 = vmatprep.subr.mxu0 0.0
  %659 = vmatpush1.msra.mxu0 %v204
  %660 = vmatprep.subr.mxu0 0.0
  %661 = vmatpush1.msra.mxu0 %v205
  %662 = vmatprep.subr.mxu0 0.0
  %663 = vmatpush1.msra.mxu0 %v206
  %664 = vmatprep.subr.mxu0 0.0
  %665 = vmatpush1.msra.mxu0 %v207
  %666 = vmatprep.subr.mxu0 0.0
  %667 = vmatpush1.msra.mxu0 0.0
  %668 = vmatprep.subr.mxu0 0.0
  %669 = vmatpush1.msra.mxu0 0.0
  %670 = vmatprep.subr.mxu0 0.0
  %671 = vmatpush1.msra.mxu0 0.0
  %672 = vmatprep.subr.mxu0 0.0
  %673 = vmatpush1.msra.mxu0 0.0
  %674 = vmatprep.subr.mxu0 0.0
  %675 = vmatpush1.msra.mxu0 0.0
  %676 = vmatprep.subr.mxu0 0.0
  %677 = vmatpush1.msra.mxu0 0.0
  %678 = vmatprep.subr.mxu0 0.0
  %679 = vmatpush1.msra.mxu0 0.0
  %680 = vmatprep.subr.mxu0 0.0
  %681 = vmatpush1.msra.mxu0 0.0
  %682 = vmatprep.subr.mxu0 0.0
  %683 = vmatpush1.msra.mxu0 0.0
  %684 = vmatprep.subr.mxu0 0.0
  %685 = vmatpush1.msra.mxu0 0.0
  %686 = vmatprep.subr.mxu0 0.0
  %687 = vmatpush1.msra.mxu0 0.0
  %688 = vmatprep.subr.mxu0 0.0
  %689 = vmatpush1.msra.mxu0 0.0
  %690 = vmatprep.subr.mxu0 0.0
  %691 = vmatpush1.msra.mxu0 0.0
  %692 = vmatprep.subr.mxu0 0.0
  %693 = vmatpush1.msra.mxu0 0.0
  %694 = vmatprep.subr.mxu0 0.0
  %695 = vmatpush1.msra.mxu0 0.0
  %696 = vmatprep.subr.mxu0 0.0
  %697 = vmatpush1.msra.mxu0 0.0
  %698 = vmatprep.subr.mxu0 0.0
  %699 = vmatpush1.msra.mxu0 0.0
  %700 = vmatprep.subr.mxu0 0.0
  %701 = vmatpush1.msra.mxu0 0.0
  %702 = vmatprep.subr.mxu0 0.0
  %703 = vmatpush1.msra.mxu0 0.0
  %704 = vmatprep.subr.mxu0 0.0
  %705 = vmatpush1.msra.mxu0 0.0
  %706 = vmatprep.subr.mxu0 0.0
  %707 = vmatpush1.msra.mxu0 0.0
  %708 = vmatprep.subr.mxu0 0.0
  %709 = vmatpush1.msra.mxu0 0.0
  %710 = vmatprep.subr.mxu0 0.0
  %711 = vmatpush1.msra.mxu0 0.0
  %712 = vmatprep.subr.mxu0 0.0
  %713 = vmatpush1.msra.mxu0 0.0
  %714 = vmatprep.mubr.f32.mxu0 0.0
  %715 = vmatmul.mubr.f32.gmra.mrb[0].mxu0 %v648
  %v716 = vpop.f32.mrb[0].mxu0
  %v717 = vadd.f32 %v433, %v716
  %v718 = vpop.f32.mrb[0].mxu0
  %719 = vdwg.mxu0
  %v720 = vxor.u32 %v717, 2147483648
  %v721 = vmul.f32 %v720, 1.442695
  %v722 = vpow.pop %v721
  %v723 = vadd.f32 %v722, 1.0
  %v724 = vrcp.pop %v723
  %v725 = vmul.f32 1.0, %v724
  %v726 = vmul.f32 %v725, 2.0
  %v727 = vsub.f32 %v726, 1.0
  %v728 = vmul.f32 %v725, %v531
  %730 = vrot.lane.b32.xlu0 %v727, 64
  %v731 = vpop.permute.xlu0 %730
  %v733 = vmul.f32 %v725, %v731
  %735 = vrot.lane.b32.xlu0 %v733, 32
  %v736 = vpop.permute.xlu0 %735
  %v738 = vadd.f32 %v728, %v736
  %v739 = vtanh.pop %v738
  %741 = vrot.lane.b32.xlu0 %v739, 64
  %v742 = vpop.permute.xlu0 %741
  %v744 = vmul.f32 %v725, %v742
  %s745 = scalar_lea.vmem [#allocation2], 24
  %v746 = vld [vmem:[%s745] sm:$0xff]
  %748 = vrot.lane.b32.xlu0 %v640, 32
  %v749 = vpop.permute.xlu0 %748
  %v750 = vsel %vm216, %v749, 0
  %752 = vmatprep.subr.mxu0 0.0
  %753 = vmatpush1.msra.mxu0 %v196
  %754 = vmatprep.subr.mxu0 0.0
  %755 = vmatpush1.msra.mxu0 %v197
  %756 = vmatprep.subr.mxu0 0.0
  %757 = vmatpush1.msra.mxu0 %v198
  %758 = vmatprep.subr.mxu0 0.0
  %759 = vmatpush1.msra.mxu0 %v199
  %760 = vmatprep.subr.mxu0 0.0
  %761 = vmatpush1.msra.mxu0 0.0
  %762 = vmatprep.subr.mxu0 0.0
  %763 = vmatpush1.msra.mxu0 0.0
  %764 = vmatprep.subr.mxu0 0.0
  %765 = vmatpush1.msra.mxu0 0.0
  %766 = vmatprep.subr.mxu0 0.0
  %767 = vmatpush1.msra.mxu0 0.0
  %768 = vmatprep.subr.mxu0 0.0
  %769 = vmatpush1.msra.mxu0 0.0
  %770 = vmatprep.subr.mxu0 0.0
  %771 = vmatpush1.msra.mxu0 0.0
  %772 = vmatprep.subr.mxu0 0.0
  %773 = vmatpush1.msra.mxu0 0.0
  %774 = vmatprep.subr.mxu0 0.0
  %775 = vmatpush1.msra.mxu0 0.0
  %776 = vmatprep.subr.mxu0 0.0
  %777 = vmatpush1.msra.mxu0 0.0
  %778 = vmatprep.subr.mxu0 0.0
  %779 = vmatpush1.msra.mxu0 0.0
  %780 = vmatprep.subr.mxu0 0.0
  %781 = vmatpush1.msra.mxu0 0.0
  %782 = vmatprep.subr.mxu0 0.0
  %783 = vmatpush1.msra.mxu0 0.0
  %784 = vmatprep.subr.mxu0 0.0
  %785 = vmatpush1.msra.mxu0 0.0
  %786 = vmatprep.subr.mxu0 0.0
  %787 = vmatpush1.msra.mxu0 0.0
  %788 = vmatprep.subr.mxu0 0.0
  %789 = vmatpush1.msra.mxu0 0.0
  %790 = vmatprep.subr.mxu0 0.0
  %791 = vmatpush1.msra.mxu0 0.0
  %792 = vmatprep.subr.mxu0 0.0
  %793 = vmatpush1.msra.mxu0 0.0
  %794 = vmatprep.subr.mxu0 0.0
  %795 = vmatpush1.msra.mxu0 0.0
  %796 = vmatprep.subr.mxu0 0.0
  %797 = vmatpush1.msra.mxu0 0.0
  %798 = vmatprep.subr.mxu0 0.0
  %799 = vmatpush1.msra.mxu0 0.0
  %800 = vmatprep.subr.mxu0 0.0
  %801 = vmatpush1.msra.mxu0 0.0
  %802 = vmatprep.subr.mxu0 0.0
  %803 = vmatpush1.msra.mxu0 0.0
  %804 = vmatprep.subr.mxu0 0.0
  %805 = vmatpush1.msra.mxu0 0.0
  %806 = vmatprep.subr.mxu0 0.0
  %807 = vmatpush1.msra.mxu0 0.0
  %808 = vmatprep.subr.mxu0 0.0
  %809 = vmatpush1.msra.mxu0 0.0
  %810 = vmatprep.subr.mxu0 0.0
  %811 = vmatpush1.msra.mxu0 0.0
  %812 = vmatprep.subr.mxu0 0.0
  %813 = vmatpush1.msra.mxu0 0.0
  %814 = vmatprep.subr.mxu0 0.0
  %815 = vmatpush1.msra.mxu0 0.0
  %816 = vmatprep.mubr.f32.mxu0 0.0
  %817 = vmatmul.mubr.f32.gmra.mrb[0].mxu0 %v750
  %v818 = vpop.f32.mrb[0].mxu0
  %v819 = vadd.f32 0.0, %v818
  %v820 = vpop.f32.mrb[0].mxu0
  %821 = vdwg.mxu0
  %v822 = vadd.f32 %v746, %v819
  %v823 = vxor.u32 %v822, 2147483648
  %v824 = vmul.f32 %v823, 1.442695
  %v825 = vpow.pop %v824
  %v826 = vadd.f32 %v825, 1.0
  %v827 = vrcp.pop %v826
  %v828 = vmul.f32 1.0, %v827
  %v829 = vmul.f32 %v828, 2.0
  %v830 = vsub.f32 %v829, 1.0
  %v831 = vmul.f32 %v828, %v634
  %833 = vrot.lane.b32.xlu0 %v830, 64
  %v834 = vpop.permute.xlu0 %833
  %v836 = vmul.f32 %v828, %v834
  %838 = vrot.lane.b32.xlu0 %v836, 32
  %v839 = vpop.permute.xlu0 %838
  %v841 = vadd.f32 %v831, %v839
  %v842 = vtanh.pop %v841
  %844 = vrot.lane.b32.xlu0 %v842, 64
  %v845 = vpop.permute.xlu0 %844
  %v847 = vmul.f32 %v828, %v845
  %850 = vrot.lane.b32.xlu0 %v744, 64
  %v851 = vpop.permute.xlu0 %850
  %v853 = vsel %vm216, %v749, %v851
  %v855 = vsel %vm435, %v853, 0
  %857 = vmatprep.subr.mxu0 0.0
  %858 = vmatpush1.msra.mxu0 %v200
  %859 = vmatprep.subr.mxu0 0.0
  %860 = vmatpush1.msra.mxu0 %v201
  %861 = vmatprep.subr.mxu0 0.0
  %862 = vmatpush1.msra.mxu0 %v202
  %863 = vmatprep.subr.mxu0 0.0
  %864 = vmatpush1.msra.mxu0 %v203
  %865 = vmatprep.subr.mxu0 0.0
  %866 = vmatpush1.msra.mxu0 %v204
  %867 = vmatprep.subr.mxu0 0.0
  %868 = vmatpush1.msra.mxu0 %v205
  %869 = vmatprep.subr.mxu0 0.0
  %870 = vmatpush1.msra.mxu0 %v206
  %871 = vmatprep.subr.mxu0 0.0
  %872 = vmatpush1.msra.mxu0 %v207
  %873 = vmatprep.subr.mxu0 0.0
  %874 = vmatpush1.msra.mxu0 0.0
  %875 = vmatprep.subr.mxu0 0.0
  %876 = vmatpush1.msra.mxu0 0.0
  %877 = vmatprep.subr.mxu0 0.0
  %878 = vmatpush1.msra.mxu0 0.0
  %879 = vmatprep.subr.mxu0 0.0
  %880 = vmatpush1.msra.mxu0 0.0
  %881 = vmatprep.subr.mxu0 0.0
  %882 = vmatpush1.msra.mxu0 0.0
  %883 = vmatprep.subr.mxu0 0.0
  %884 = vmatpush1.msra.mxu0 0.0
  %885 = vmatprep.subr.mxu0 0.0
  %886 = vmatpush1.msra.mxu0 0.0
  %887 = vmatprep.subr.mxu0 0.0
  %888 = vmatpush1.msra.mxu0 0.0
  %889 = vmatprep.subr.mxu0 0.0
  %890 = vmatpush1.msra.mxu0 0.0
  %891 = vmatprep.subr.mxu0 0.0
  %892 = vmatpush1.msra.mxu0 0.0
  %893 = vmatprep.subr.mxu0 0.0
  %894 = vmatpush1.msra.mxu0 0.0
  %895 = vmatprep.subr.mxu0 0.0
  %896 = vmatpush1.msra.mxu0 0.0
  %897 = vmatprep.subr.mxu0 0.0
  %898 = vmatpush1.msra.mxu0 0.0
  %899 = vmatprep.subr.mxu0 0.0
  %900 = vmatpush1.msra.mxu0 0.0
  %901 = vmatprep.subr.mxu0 0.0
  %902 = vmatpush1.msra.mxu0 0.0
  %903 = vmatprep.subr.mxu0 0.0
  %904 = vmatpush1.msra.mxu0 0.0
  %905 = vmatprep.subr.mxu0 0.0
  %906 = vmatpush1.msra.mxu0 0.0
  %907 = vmatprep.subr.mxu0 0.0
  %908 = vmatpush1.msra.mxu0 0.0
  %909 = vmatprep.subr.mxu0 0.0
  %910 = vmatpush1.msra.mxu0 0.0
  %911 = vmatprep.subr.mxu0 0.0
  %912 = vmatpush1.msra.mxu0 0.0
  %913 = vmatprep.subr.mxu0 0.0
  %914 = vmatpush1.msra.mxu0 0.0
  %915 = vmatprep.subr.mxu0 0.0
  %916 = vmatpush1.msra.mxu0 0.0
  %917 = vmatprep.subr.mxu0 0.0
  %918 = vmatpush1.msra.mxu0 0.0
  %919 = vmatprep.subr.mxu0 0.0
  %920 = vmatpush1.msra.mxu0 0.0
  %921 = vmatprep.mubr.f32.mxu0 0.0
  %922 = vmatmul.mubr.f32.gmra.mrb[0].mxu0 %v855
  %v923 = vpop.f32.mrb[0].mxu0
  %v924 = vadd.f32 %v433, %v923
  %v925 = vpop.f32.mrb[0].mxu0
  %926 = vdwg.mxu0
  %v927 = vxor.u32 %v924, 2147483648
  %v928 = vmul.f32 %v927, 1.442695
  %v929 = vpow.pop %v928
  %v930 = vadd.f32 %v929, 1.0
  %v931 = vrcp.pop %v930
  %v932 = vmul.f32 1.0, %v931
  %v933 = vmul.f32 %v932, 2.0
  %v934 = vsub.f32 %v933, 1.0
  %v935 = vmul.f32 %v932, %v738
  %937 = vrot.lane.b32.xlu0 %v934, 64
  %v938 = vpop.permute.xlu0 %937
  %v940 = vmul.f32 %v932, %v938
  %942 = vrot.lane.b32.xlu0 %v940, 32
  %v943 = vpop.permute.xlu0 %942
  %v945 = vadd.f32 %v935, %v943
  %v946 = vtanh.pop %v945
  %948 = vrot.lane.b32.xlu0 %v946, 64
  %v949 = vpop.permute.xlu0 %948
  %v951 = vmul.f32 %v932, %v949
  %s952 = scalar_lea.vmem [#allocation2], 32
  %v953 = vld [vmem:[%s952] sm:$0xff]
  %955 = vrot.lane.b32.xlu0 %v847, 32
  %v956 = vpop.permute.xlu0 %955
  %v957 = vsel %vm216, %v956, 0
  %959 = vmatprep.subr.mxu0 0.0
  %960 = vmatpush1.msra.mxu0 %v196
  %961 = vmatprep.subr.mxu0 0.0
  %962 = vmatpush1.msra.mxu0 %v197
  %963 = vmatprep.subr.mxu0 0.0
  %964 = vmatpush1.msra.mxu0 %v198
  %965 = vmatprep.subr.mxu0 0.0
  %966 = vmatpush1.msra.mxu0 %v199
  %967 = vmatprep.subr.mxu0 0.0
  %968 = vmatpush1.msra.mxu0 0.0
  %969 = vmatprep.subr.mxu0 0.0
  %970 = vmatpush1.msra.mxu0 0.0
  %971 = vmatprep.subr.mxu0 0.0
  %972 = vmatpush1.msra.mxu0 0.0
  %973 = vmatprep.subr.mxu0 0.0
  %974 = vmatpush1.msra.mxu0 0.0
  %975 = vmatprep.subr.mxu0 0.0
  %976 = vmatpush1.msra.mxu0 0.0
  %977 = vmatprep.subr.mxu0 0.0
  %978 = vmatpush1.msra.mxu0 0.0
  %979 = vmatprep.subr.mxu0 0.0
  %980 = vmatpush1.msra.mxu0 0.0
  %981 = vmatprep.subr.mxu0 0.0
  %982 = vmatpush1.msra.mxu0 0.0
  %983 = vmatprep.subr.mxu0 0.0
  %984 = vmatpush1.msra.mxu0 0.0
  %985 = vmatprep.subr.mxu0 0.0
  %986 = vmatpush1.msra.mxu0 0.0
  %987 = vmatprep.subr.mxu0 0.0
  %988 = vmatpush1.msra.mxu0 0.0
  %989 = vmatprep.subr.mxu0 0.0
  %990 = vmatpush1.msra.mxu0 0.0
  %991 = vmatprep.subr.mxu0 0.0
  %992 = vmatpush1.msra.mxu0 0.0
  %993 = vmatprep.subr.mxu0 0.0
  %994 = vmatpush1.msra.mxu0 0.0
  %995 = vmatprep.subr.mxu0 0.0
  %996 = vmatpush1.msra.mxu0 0.0
  %997 = vmatprep.subr.mxu0 0.0
  %998 = vmatpush1.msra.mxu0 0.0
  %999 = vmatprep.subr.mxu0 0.0
  %1000 = vmatpush1.msra.mxu0 0.0
  %1001 = vmatprep.subr.mxu0 0.0
  %1002 = vmatpush1.msra.mxu0 0.0
  %1003 = vmatprep.subr.mxu0 0.0
  %1004 = vmatpush1.msra.mxu0 0.0
  %1005 = vmatprep.subr.mxu0 0.0
  %1006 = vmatpush1.msra.mxu0 0.0
  %1007 = vmatprep.subr.mxu0 0.0
  %1008 = vmatpush1.msra.mxu0 0.0
  %1009 = vmatprep.subr.mxu0 0.0
  %1010 = vmatpush1.msra.mxu0 0.0
  %1011 = vmatprep.subr.mxu0 0.0
  %1012 = vmatpush1.msra.mxu0 0.0
  %1013 = vmatprep.subr.mxu0 0.0
  %1014 = vmatpush1.msra.mxu0 0.0
  %1015 = vmatprep.subr.mxu0 0.0
  %1016 = vmatpush1.msra.mxu0 0.0
  %1017 = vmatprep.subr.mxu0 0.0
  %1018 = vmatpush1.msra.mxu0 0.0
  %1019 = vmatprep.subr.mxu0 0.0
  %1020 = vmatpush1.msra.mxu0 0.0
  %1021 = vmatprep.subr.mxu0 0.0
  %1022 = vmatpush1.msra.mxu0 0.0
  %1023 = vmatprep.mubr.f32.mxu0 0.0
  %1024 = vmatmul.mubr.f32.gmra.mrb[0].mxu0 %v957
  %v1025 = vpop.f32.mrb[0].mxu0
  %v1026 = vadd.f32 0.0, %v1025
  %v1027 = vpop.f32.mrb[0].mxu0
  %1028 = vdwg.mxu0
  %v1029 = vadd.f32 %v953, %v1026
  %v1030 = vxor.u32 %v1029, 2147483648
  %v1031 = vmul.f32 %v1030, 1.442695
  %v1032 = vpow.pop %v1031
  %v1033 = vadd.f32 %v1032, 1.0
  %v1034 = vrcp.pop %v1033
  %v1035 = vmul.f32 1.0, %v1034
  %v1036 = vmul.f32 %v1035, 2.0
  %v1037 = vsub.f32 %v1036, 1.0
  %v1038 = vmul.f32 %v1035, %v841
  %1040 = vrot.lane.b32.xlu0 %v1037, 64
  %v1041 = vpop.permute.xlu0 %1040
  %v1043 = vmul.f32 %v1035, %v1041
  %1045 = vrot.lane.b32.xlu0 %v1043, 32
  %v1046 = vpop.permute.xlu0 %1045
  %v1048 = vadd.f32 %v1038, %v1046
  %v1049 = vtanh.pop %v1048
  %1051 = vrot.lane.b32.xlu0 %v1049, 64
  %v1052 = vpop.permute.xlu0 %1051
  %v1054 = vmul.f32 %v1035, %v1052
  %1057 = vrot.lane.b32.xlu0 %v951, 64
  %v1058 = vpop.permute.xlu0 %1057
  %v1060 = vsel %vm216, %v956, %v1058
  %v1062 = vsel %vm435, %v1060, 0
  %1064 = vmatprep.subr.mxu0 0.0
  %1065 = vmatpush1.msra.mxu0 %v200
  %1066 = vmatprep.subr.mxu0 0.0
  %1067 = vmatpush1.msra.mxu0 %v201
  %1068 = vmatprep.subr.mxu0 0.0
  %1069 = vmatpush1.msra.mxu0 %v202
  %1070 = vmatprep.subr.mxu0 0.0
  %1071 = vmatpush1.msra.mxu0 %v203
  %1072 = vmatprep.subr.mxu0 0.0
  %1073 = vmatpush1.msra.mxu0 %v204
  %1074 = vmatprep.subr.mxu0 0.0
  %1075 = vmatpush1.msra.mxu0 %v205
  %1076 = vmatprep.subr.mxu0 0.0
  %1077 = vmatpush1.msra.mxu0 %v206
  %1078 = vmatprep.subr.mxu0 0.0
  %1079 = vmatpush1.msra.mxu0 %v207
  %1080 = vmatprep.subr.mxu0 0.0
  %1081 = vmatpush1.msra.mxu0 0.0
  %1082 = vmatprep.subr.mxu0 0.0
  %1083 = vmatpush1.msra.mxu0 0.0
  %1084 = vmatprep.subr.mxu0 0.0
  %1085 = vmatpush1.msra.mxu0 0.0
  %1086 = vmatprep.subr.mxu0 0.0
  %1087 = vmatpush1.msra.mxu0 0.0
  %1088 = vmatprep.subr.mxu0 0.0
  %1089 = vmatpush1.msra.mxu0 0.0
  %1090 = vmatprep.subr.mxu0 0.0
  %1091 = vmatpush1.msra.mxu0 0.0
  %1092 = vmatprep.subr.mxu0 0.0
  %1093 = vmatpush1.msra.mxu0 0.0
  %1094 = vmatprep.subr.mxu0 0.0
  %1095 = vmatpush1.msra.mxu0 0.0
  %1096 = vmatprep.subr.mxu0 0.0
  %1097 = vmatpush1.msra.mxu0 0.0
  %1098 = vmatprep.subr.mxu0 0.0
  %1099 = vmatpush1.msra.mxu0 0.0
  %1100 = vmatprep.subr.mxu0 0.0
  %1101 = vmatpush1.msra.mxu0 0.0
  %1102 = vmatprep.subr.mxu0 0.0
  %1103 = vmatpush1.msra.mxu0 0.0
  %1104 = vmatprep.subr.mxu0 0.0
  %1105 = vmatpush1.msra.mxu0 0.0
  %1106 = vmatprep.subr.mxu0 0.0
  %1107 = vmatpush1.msra.mxu0 0.0
  %1108 = vmatprep.subr.mxu0 0.0
  %1109 = vmatpush1.msra.mxu0 0.0
  %1110 = vmatprep.subr.mxu0 0.0
  %1111 = vmatpush1.msra.mxu0 0.0
  %1112 = vmatprep.subr.mxu0 0.0
  %1113 = vmatpush1.msra.mxu0 0.0
  %1114 = vmatprep.subr.mxu0 0.0
  %1115 = vmatpush1.msra.mxu0 0.0
  %1116 = vmatprep.subr.mxu0 0.0
  %1117 = vmatpush1.msra.mxu0 0.0
  %1118 = vmatprep.subr.mxu0 0.0
  %1119 = vmatpush1.msra.mxu0 0.0
  %1120 = vmatprep.subr.mxu0 0.0
  %1121 = vmatpush1.msra.mxu0 0.0
  %1122 = vmatprep.subr.mxu0 0.0
  %1123 = vmatpush1.msra.mxu0 0.0
  %1124 = vmatprep.subr.mxu0 0.0
  %1125 = vmatpush1.msra.mxu0 0.0
  %1126 = vmatprep.subr.mxu0 0.0
  %1127 = vmatpush1.msra.mxu0 0.0
  %1128 = vmatprep.mubr.f32.mxu0 0.0
  %1129 = vmatmul.mubr.f32.gmra.mrb[0].mxu0 %v1062
  %v1130 = vpop.f32.mrb[0].mxu0
  %v1131 = vadd.f32 %v433, %v1130
  %v1132 = vpop.f32.mrb[0].mxu0
  %1133 = vdwg.mxu0
  %v1134 = vxor.u32 %v1131, 2147483648
  %v1135 = vmul.f32 %v1134, 1.442695
  %v1136 = vpow.pop %v1135
  %v1137 = vadd.f32 %v1136, 1.0
  %v1138 = vrcp.pop %v1137
  %v1139 = vmul.f32 1.0, %v1138
  %v1140 = vmul.f32 %v1139, 2.0
  %v1141 = vsub.f32 %v1140, 1.0
  %v1142 = vmul.f32 %v1139, %v945
  %1144 = vrot.lane.b32.xlu0 %v1141, 64
  %v1145 = vpop.permute.xlu0 %1144
  %v1147 = vmul.f32 %v1139, %v1145
  %1149 = vrot.lane.b32.xlu0 %v1147, 32
  %v1150 = vpop.permute.xlu0 %1149
  %v1152 = vadd.f32 %v1142, %v1150
  %v1153 = vtanh.pop %v1152
  %1155 = vrot.lane.b32.xlu0 %v1153, 64
  %v1156 = vpop.permute.xlu0 %1155
  %v1158 = vmul.f32 %v1139, %v1156
  %s1159 = scalar_lea.vmem [#allocation2], 40
  %v1160 = vld [vmem:[%s1159] sm:$0xff]
  %1162 = vrot.lane.b32.xlu0 %v1054, 32
  %v1163 = vpop.permute.xlu0 %1162
  %v1164 = vsel %vm216, %v1163, 0
  %1166 = vmatprep.subr.mxu0 0.0
  %1167 = vmatpush1.msra.mxu0 %v196
  %1168 = vmatprep.subr.mxu0 0.0
  %1169 = vmatpush1.msra.mxu0 %v197
  %1170 = vmatprep.subr.mxu0 0.0
  %1171 = vmatpush1.msra.mxu0 %v198
  %1172 = vmatprep.subr.mxu0 0.0
  %1173 = vmatpush1.msra.mxu0 %v199
  %1174 = vmatprep.subr.mxu0 0.0
  %1175 = vmatpush1.msra.mxu0 0.0
  %1176 = vmatprep.subr.mxu0 0.0
  %1177 = vmatpush1.msra.mxu0 0.0
  %1178 = vmatprep.subr.mxu0 0.0
  %1179 = vmatpush1.msra.mxu0 0.0
  %1180 = vmatprep.subr.mxu0 0.0
  %1181 = vmatpush1.msra.mxu0 0.0
  %1182 = vmatprep.subr.mxu0 0.0
  %1183 = vmatpush1.msra.mxu0 0.0
  %1184 = vmatprep.subr.mxu0 0.0
  %1185 = vmatpush1.msra.mxu0 0.0
  %1186 = vmatprep.subr.mxu0 0.0
  %1187 = vmatpush1.msra.mxu0 0.0
  %1188 = vmatprep.subr.mxu0 0.0
  %1189 = vmatpush1.msra.mxu0 0.0
  %1190 = vmatprep.subr.mxu0 0.0
  %1191 = vmatpush1.msra.mxu0 0.0
  %1192 = vmatprep.subr.mxu0 0.0
  %1193 = vmatpush1.msra.mxu0 0.0
  %1194 = vmatprep.subr.mxu0 0.0
  %1195 = vmatpush1.msra.mxu0 0.0
  %1196 = vmatprep.subr.mxu0 0.0
  %1197 = vmatpush1.msra.mxu0 0.0
  %1198 = vmatprep.subr.mxu0 0.0
  %1199 = vmatpush1.msra.mxu0 0.0
  %1200 = vmatprep.subr.mxu0 0.0
  %1201 = vmatpush1.msra.mxu0 0.0
  %1202 = vmatprep.subr.mxu0 0.0
  %1203 = vmatpush1.msra.mxu0 0.0
  %1204 = vmatprep.subr.mxu0 0.0
  %1205 = vmatpush1.msra.mxu0 0.0
  %1206 = vmatprep.subr.mxu0 0.0
  %1207 = vmatpush1.msra.mxu0 0.0
  %1208 = vmatprep.subr.mxu0 0.0
  %1209 = vmatpush1.msra.mxu0 0.0
  %1210 = vmatprep.subr.mxu0 0.0
  %1211 = vmatpush1.msra.mxu0 0.0
  %1212 = vmatprep.subr.mxu0 0.0
  %1213 = vmatpush1.msra.mxu0 0.0
  %1214 = vmatprep.subr.mxu0 0.0
  %1215 = vmatpush1.msra.mxu0 0.0
  %1216 = vmatprep.subr.mxu0 0.0
  %1217 = vmatpush1.msra.mxu0 0.0
  %1218 = vmatprep.subr.mxu0 0.0
  %1219 = vmatpush1.msra.mxu0 0.0
  %1220 = vmatprep.subr.mxu0 0.0
  %1221 = vmatpush1.msra.mxu0 0.0
  %1222 = vmatprep.subr.mxu0 0.0
  %1223 = vmatpush1.msra.mxu0 0.0
  %1224 = vmatprep.subr.mxu0 0.0
  %1225 = vmatpush1.msra.mxu0 0.0
  %1226 = vmatprep.subr.mxu0 0.0
  %1227 = vmatpush1.msra.mxu0 0.0
  %1228 = vmatprep.subr.mxu0 0.0
  %1229 = vmatpush1.msra.mxu0 0.0
  %1230 = vmatprep.mubr.f32.mxu0 0.0
  %1231 = vmatmul.mubr.f32.gmra.mrb[0].mxu0 %v1164
  %v1232 = vpop.f32.mrb[0].mxu0
  %v1233 = vadd.f32 0.0, %v1232
  %v1234 = vpop.f32.mrb[0].mxu0
  %1235 = vdwg.mxu0
  %v1236 = vadd.f32 %v1160, %v1233
  %v1237 = vxor.u32 %v1236, 2147483648
  %v1238 = vmul.f32 %v1237, 1.442695
  %v1239 = vpow.pop %v1238
  %v1240 = vadd.f32 %v1239, 1.0
  %v1241 = vrcp.pop %v1240
  %v1242 = vmul.f32 1.0, %v1241
  %v1243 = vmul.f32 %v1242, 2.0
  %v1244 = vsub.f32 %v1243, 1.0
  %v1245 = vmul.f32 %v1242, %v1048
  %1247 = vrot.lane.b32.xlu0 %v1244, 64
  %v1248 = vpop.permute.xlu0 %1247
  %v1250 = vmul.f32 %v1242, %v1248
  %1252 = vrot.lane.b32.xlu0 %v1250, 32
  %v1253 = vpop.permute.xlu0 %1252
  %v1255 = vadd.f32 %v1245, %v1253
  %v1256 = vtanh.pop %v1255
  %1258 = vrot.lane.b32.xlu0 %v1256, 64
  %v1259 = vpop.permute.xlu0 %1258
  %v1261 = vmul.f32 %v1242, %v1259
  %1264 = vrot.lane.b32.xlu0 %v1158, 64
  %v1265 = vpop.permute.xlu0 %1264
  %v1267 = vsel %vm216, %v1163, %v1265
  %v1269 = vsel %vm435, %v1267, 0
  %1271 = vmatprep.subr.mxu0 0.0
  %1272 = vmatpush1.msra.mxu0 %v200
  %1273 = vmatprep.subr.mxu0 0.0
  %1274 = vmatpush1.msra.mxu0 %v201
  %1275 = vmatprep.subr.mxu0 0.0
  %1276 = vmatpush1.msra.mxu0 %v202
  %1277 = vmatprep.subr.mxu0 0.0
  %1278 = vmatpush1.msra.mxu0 %v203
  %1279 = vmatprep.subr.mxu0 0.0
  %1280 = vmatpush1.msra.mxu0 %v204
  %1281 = vmatprep.subr.mxu0 0.0
  %1282 = vmatpush1.msra.mxu0 %v205
  %1283 = vmatprep.subr.mxu0 0.0
  %1284 = vmatpush1.msra.mxu0 %v206
  %1285 = vmatprep.subr.mxu0 0.0
  %1286 = vmatpush1.msra.mxu0 %v207
  %1287 = vmatprep.subr.mxu0 0.0
  %1288 = vmatpush1.msra.mxu0 0.0
  %1289 = vmatprep.subr.mxu0 0.0
  %1290 = vmatpush1.msra.mxu0 0.0
  %1291 = vmatprep.subr.mxu0 0.0
  %1292 = vmatpush1.msra.mxu0 0.0
  %1293 = vmatprep.subr.mxu0 0.0
  %1294 = vmatpush1.msra.mxu0 0.0
  %1295 = vmatprep.subr.mxu0 0.0
  %1296 = vmatpush1.msra.mxu0 0.0
  %1297 = vmatprep.subr.mxu0 0.0
  %1298 = vmatpush1.msra.mxu0 0.0
  %1299 = vmatprep.subr.mxu0 0.0
  %1300 = vmatpush1.msra.mxu0 0.0
  %1301 = vmatprep.subr.mxu0 0.0
  %1302 = vmatpush1.msra.mxu0 0.0
  %1303 = vmatprep.subr.mxu0 0.0
  %1304 = vmatpush1.msra.mxu0 0.0
  %1305 = vmatprep.subr.mxu0 0.0
  %1306 = vmatpush1.msra.mxu0 0.0
  %1307 = vmatprep.subr.mxu0 0.0
  %1308 = vmatpush1.msra.mxu0 0.0
  %1309 = vmatprep.subr.mxu0 0.0
  %1310 = vmatpush1.msra.mxu0 0.0
  %1311 = vmatprep.subr.mxu0 0.0
  %1312 = vmatpush1.msra.mxu0 0.0
  %1313 = vmatprep.subr.mxu0 0.0
  %1314 = vmatpush1.msra.mxu0 0.0
  %1315 = vmatprep.subr.mxu0 0.0
  %1316 = vmatpush1.msra.mxu0 0.0
  %1317 = vmatprep.subr.mxu0 0.0
  %1318 = vmatpush1.msra.mxu0 0.0
  %1319 = vmatprep.subr.mxu0 0.0
  %1320 = vmatpush1.msra.mxu0 0.0
  %1321 = vmatprep.subr.mxu0 0.0
  %1322 = vmatpush1.msra.mxu0 0.0
  %1323 = vmatprep.subr.mxu0 0.0
  %1324 = vmatpush1.msra.mxu0 0.0
  %1325 = vmatprep.subr.mxu0 0.0
  %1326 = vmatpush1.msra.mxu0 0.0
  %1327 = vmatprep.subr.mxu0 0.0
  %1328 = vmatpush1.msra.mxu0 0.0
  %1329 = vmatprep.subr.mxu0 0.0
  %1330 = vmatpush1.msra.mxu0 0.0
  %1331 = vmatprep.subr.mxu0 0.0
  %1332 = vmatpush1.msra.mxu0 0.0
  %1333 = vmatprep.subr.mxu0 0.0
  %1334 = vmatpush1.msra.mxu0 0.0
  %1335 = vmatprep.mubr.f32.mxu0 0.0
  %1336 = vmatmul.mubr.f32.gmra.mrb[0].mxu0 %v1269
  %v1337 = vpop.f32.mrb[0].mxu0
  %v1338 = vadd.f32 %v433, %v1337
  %v1339 = vpop.f32.mrb[0].mxu0
  %1340 = vdwg.mxu0
  %v1341 = vxor.u32 %v1338, 2147483648
  %v1342 = vmul.f32 %v1341, 1.442695
  %v1343 = vpow.pop %v1342
  %v1344 = vadd.f32 %v1343, 1.0
  %v1345 = vrcp.pop %v1344
  %v1346 = vmul.f32 1.0, %v1345
  %v1347 = vmul.f32 %v1346, 2.0
  %v1348 = vsub.f32 %v1347, 1.0
  %v1349 = vmul.f32 %v1346, %v1152
  %1351 = vrot.lane.b32.xlu0 %v1348, 64
  %v1352 = vpop.permute.xlu0 %1351
  %v1354 = vmul.f32 %v1346, %v1352
  %1356 = vrot.lane.b32.xlu0 %v1354, 32
  %v1357 = vpop.permute.xlu0 %1356
  %v1359 = vadd.f32 %v1349, %v1357
  %v1360 = vtanh.pop %v1359
  %1362 = vrot.lane.b32.xlu0 %v1360, 64
  %v1363 = vpop.permute.xlu0 %1362
  %v1365 = vmul.f32 %v1346, %v1363
  %s1366 = scalar_lea.vmem [#allocation2], 48
  %v1367 = vld [vmem:[%s1366] sm:$0xff]
  %1369 = vrot.lane.b32.xlu0 %v1261, 32
  %v1370 = vpop.permute.xlu0 %1369
  %v1371 = vsel %vm216, %v1370, 0
  %1373 = vmatprep.subr.mxu0 0.0
  %1374 = vmatpush1.msra.mxu0 %v196
  %1375 = vmatprep.subr.mxu0 0.0
  %1376 = vmatpush1.msra.mxu0 %v197
  %1377 = vmatprep.subr.mxu0 0.0
  %1378 = vmatpush1.msra.mxu0 %v198
  %1379 = vmatprep.subr.mxu0 0.0
  %1380 = vmatpush1.msra.mxu0 %v199
  %1381 = vmatprep.subr.mxu0 0.0
  %1382 = vmatpush1.msra.mxu0 0.0
  %1383 = vmatprep.subr.mxu0 0.0
  %1384 = vmatpush1.msra.mxu0 0.0
  %1385 = vmatprep.subr.mxu0 0.0
  %1386 = vmatpush1.msra.mxu0 0.0
  %1387 = vmatprep.subr.mxu0 0.0
  %1388 = vmatpush1.msra.mxu0 0.0
  %1389 = vmatprep.subr.mxu0 0.0
  %1390 = vmatpush1.msra.mxu0 0.0
  %1391 = vmatprep.subr.mxu0 0.0
  %1392 = vmatpush1.msra.mxu0 0.0
  %1393 = vmatprep.subr.mxu0 0.0
  %1394 = vmatpush1.msra.mxu0 0.0
  %1395 = vmatprep.subr.mxu0 0.0
  %1396 = vmatpush1.msra.mxu0 0.0
  %1397 = vmatprep.subr.mxu0 0.0
  %1398 = vmatpush1.msra.mxu0 0.0
  %1399 = vmatprep.subr.mxu0 0.0
  %1400 = vmatpush1.msra.mxu0 0.0
  %1401 = vmatprep.subr.mxu0 0.0
  %1402 = vmatpush1.msra.mxu0 0.0
  %1403 = vmatprep.subr.mxu0 0.0
  %1404 = vmatpush1.msra.mxu0 0.0
  %1405 = vmatprep.subr.mxu0 0.0
  %1406 = vmatpush1.msra.mxu0 0.0
  %1407 = vmatprep.subr.mxu0 0.0
  %1408 = vmatpush1.msra.mxu0 0.0
  %1409 = vmatprep.subr.mxu0 0.0
  %1410 = vmatpush1.msra.mxu0 0.0
  %1411 = vmatprep.subr.mxu0 0.0
  %1412 = vmatpush1.msra.mxu0 0.0
  %1413 = vmatprep.subr.mxu0 0.0
  %1414 = vmatpush1.msra.mxu0 0.0
  %1415 = vmatprep.subr.mxu0 0.0
  %1416 = vmatpush1.msra.mxu0 0.0
  %1417 = vmatprep.subr.mxu0 0.0
  %1418 = vmatpush1.msra.mxu0 0.0
  %1419 = vmatprep.subr.mxu0 0.0
  %1420 = vmatpush1.msra.mxu0 0.0
  %1421 = vmatprep.subr.mxu0 0.0
  %1422 = vmatpush1.msra.mxu0 0.0
  %1423 = vmatprep.subr.mxu0 0.0
  %1424 = vmatpush1.msra.mxu0 0.0
  %1425 = vmatprep.subr.mxu0 0.0
  %1426 = vmatpush1.msra.mxu0 0.0
  %1427 = vmatprep.subr.mxu0 0.0
  %1428 = vmatpush1.msra.mxu0 0.0
  %1429 = vmatprep.subr.mxu0 0.0
  %1430 = vmatpush1.msra.mxu0 0.0
  %1431 = vmatprep.subr.mxu0 0.0
  %1432 = vmatpush1.msra.mxu0 0.0
  %1433 = vmatprep.subr.mxu0 0.0
  %1434 = vmatpush1.msra.mxu0 0.0
  %1435 = vmatprep.subr.mxu0 0.0
  %1436 = vmatpush1.msra.mxu0 0.0
  %1437 = vmatprep.mubr.f32.mxu0 0.0
  %1438 = vmatmul.mubr.f32.gmra.mrb[0].mxu0 %v1371
  %v1439 = vpop.f32.mrb[0].mxu0
  %v1440 = vadd.f32 0.0, %v1439
  %v1441 = vpop.f32.mrb[0].mxu0
  %1442 = vdwg.mxu0
  %v1443 = vadd.f32 %v1367, %v1440
  %v1444 = vxor.u32 %v1443, 2147483648
  %v1445 = vmul.f32 %v1444, 1.442695
  %v1446 = vpow.pop %v1445
  %v1447 = vadd.f32 %v1446, 1.0
  %v1448 = vrcp.pop %v1447
  %v1449 = vmul.f32 1.0, %v1448
  %v1450 = vmul.f32 %v1449, 2.0
  %v1451 = vsub.f32 %v1450, 1.0
  %v1452 = vmul.f32 %v1449, %v1255
  %1454 = vrot.lane.b32.xlu0 %v1451, 64
  %v1455 = vpop.permute.xlu0 %1454
  %v1457 = vmul.f32 %v1449, %v1455
  %1459 = vrot.lane.b32.xlu0 %v1457, 32
  %v1460 = vpop.permute.xlu0 %1459
  %v1462 = vadd.f32 %v1452, %v1460
  %v1463 = vtanh.pop %v1462
  %1465 = vrot.lane.b32.xlu0 %v1463, 64
  %v1466 = vpop.permute.xlu0 %1465
  %v1468 = vmul.f32 %v1449, %v1466
  %1471 = vrot.lane.b32.xlu0 %v1365, 64
  %v1472 = vpop.permute.xlu0 %1471
  %v1474 = vsel %vm216, %v1370, %v1472
  %v1476 = vsel %vm435, %v1474, 0
  %1478 = vmatprep.subr.mxu0 0.0
  %1479 = vmatpush1.msra.mxu0 %v200
  %1480 = vmatprep.subr.mxu0 0.0
  %1481 = vmatpush1.msra.mxu0 %v201
  %1482 = vmatprep.subr.mxu0 0.0
  %1483 = vmatpush1.msra.mxu0 %v202
  %1484 = vmatprep.subr.mxu0 0.0
  %1485 = vmatpush1.msra.mxu0 %v203
  %1486 = vmatprep.subr.mxu0 0.0
  %1487 = vmatpush1.msra.mxu0 %v204
  %1488 = vmatprep.subr.mxu0 0.0
  %1489 = vmatpush1.msra.mxu0 %v205
  %1490 = vmatprep.subr.mxu0 0.0
  %1491 = vmatpush1.msra.mxu0 %v206
  %1492 = vmatprep.subr.mxu0 0.0
  %1493 = vmatpush1.msra.mxu0 %v207
  %1494 = vmatprep.subr.mxu0 0.0
  %1495 = vmatpush1.msra.mxu0 0.0
  %1496 = vmatprep.subr.mxu0 0.0
  %1497 = vmatpush1.msra.mxu0 0.0
  %1498 = vmatprep.subr.mxu0 0.0
  %1499 = vmatpush1.msra.mxu0 0.0
  %1500 = vmatprep.subr.mxu0 0.0
  %1501 = vmatpush1.msra.mxu0 0.0
  %1502 = vmatprep.subr.mxu0 0.0
  %1503 = vmatpush1.msra.mxu0 0.0
  %1504 = vmatprep.subr.mxu0 0.0
  %1505 = vmatpush1.msra.mxu0 0.0
  %1506 = vmatprep.subr.mxu0 0.0
  %1507 = vmatpush1.msra.mxu0 0.0
  %1508 = vmatprep.subr.mxu0 0.0
  %1509 = vmatpush1.msra.mxu0 0.0
  %1510 = vmatprep.subr.mxu0 0.0
  %1511 = vmatpush1.msra.mxu0 0.0
  %1512 = vmatprep.subr.mxu0 0.0
  %1513 = vmatpush1.msra.mxu0 0.0
  %1514 = vmatprep.subr.mxu0 0.0
  %1515 = vmatpush1.msra.mxu0 0.0
  %1516 = vmatprep.subr.mxu0 0.0
  %1517 = vmatpush1.msra.mxu0 0.0
  %1518 = vmatprep.subr.mxu0 0.0
  %1519 = vmatpush1.msra.mxu0 0.0
  %1520 = vmatprep.subr.mxu0 0.0
  %1521 = vmatpush1.msra.mxu0 0.0
  %1522 = vmatprep.subr.mxu0 0.0
  %1523 = vmatpush1.msra.mxu0 0.0
  %1524 = vmatprep.subr.mxu0 0.0
  %1525 = vmatpush1.msra.mxu0 0.0
  %1526 = vmatprep.subr.mxu0 0.0
  %1527 = vmatpush1.msra.mxu0 0.0
  %1528 = vmatprep.subr.mxu0 0.0
  %1529 = vmatpush1.msra.mxu0 0.0
  %1530 = vmatprep.subr.mxu0 0.0
  %1531 = vmatpush1.msra.mxu0 0.0
  %1532 = vmatprep.subr.mxu0 0.0
  %1533 = vmatpush1.msra.mxu0 0.0
  %1534 = vmatprep.subr.mxu0 0.0
  %1535 = vmatpush1.msra.mxu0 0.0
  %1536 = vmatprep.subr.mxu0 0.0
  %1537 = vmatpush1.msra.mxu0 0.0
  %1538 = vmatprep.subr.mxu0 0.0
  %1539 = vmatpush1.msra.mxu0 0.0
  %1540 = vmatprep.subr.mxu0 0.0
  %1541 = vmatpush1.msra.mxu0 0.0
  %1542 = vmatprep.mubr.f32.mxu0 0.0
  %1543 = vmatmul.mubr.f32.gmra.mrb[0].mxu0 %v1476
  %v1544 = vpop.f32.mrb[0].mxu0
  %v1545 = vadd.f32 %v433, %v1544
  %v1546 = vpop.f32.mrb[0].mxu0
  %1547 = vdwg.mxu0
  %v1548 = vxor.u32 %v1545, 2147483648
  %v1549 = vmul.f32 %v1548, 1.442695
  %v1550 = vpow.pop %v1549
  %v1551 = vadd.f32 %v1550, 1.0
  %v1552 = vrcp.pop %v1551
  %v1553 = vmul.f32 1.0, %v1552
  %v1554 = vmul.f32 %v1553, 2.0
  %v1555 = vsub.f32 %v1554, 1.0
  %v1556 = vmul.f32 %v1553, %v1359
  %1558 = vrot.lane.b32.xlu0 %v1555, 64
  %v1559 = vpop.permute.xlu0 %1558
  %v1561 = vmul.f32 %v1553, %v1559
  %1563 = vrot.lane.b32.xlu0 %v1561, 32
  %v1564 = vpop.permute.xlu0 %1563
  %v1566 = vadd.f32 %v1556, %v1564
  %v1567 = vtanh.pop %v1566
  %1569 = vrot.lane.b32.xlu0 %v1567, 64
  %v1570 = vpop.permute.xlu0 %1569
  %v1572 = vmul.f32 %v1553, %v1570
  %s1573 = scalar_lea.vmem [#allocation2], 56
  %v1574 = vld [vmem:[%s1573] sm:$0xff]
  %1576 = vrot.lane.b32.xlu0 %v1468, 32
  %v1577 = vpop.permute.xlu0 %1576
  %v1578 = vsel %vm216, %v1577, 0
  %1580 = vmatprep.subr.mxu0 0.0
  %1581 = vmatpush1.msra.mxu0 %v196
  %1582 = vmatprep.subr.mxu0 0.0
  %1583 = vmatpush1.msra.mxu0 %v197
  %1584 = vmatprep.subr.mxu0 0.0
  %1585 = vmatpush1.msra.mxu0 %v198
  %1586 = vmatprep.subr.mxu0 0.0
  %1587 = vmatpush1.msra.mxu0 %v199
  %1588 = vmatprep.subr.mxu0 0.0
  %1589 = vmatpush1.msra.mxu0 0.0
  %1590 = vmatprep.subr.mxu0 0.0
  %1591 = vmatpush1.msra.mxu0 0.0
  %1592 = vmatprep.subr.mxu0 0.0
  %1593 = vmatpush1.msra.mxu0 0.0
  %1594 = vmatprep.subr.mxu0 0.0
  %1595 = vmatpush1.msra.mxu0 0.0
  %1596 = vmatprep.subr.mxu0 0.0
  %1597 = vmatpush1.msra.mxu0 0.0
  %1598 = vmatprep.subr.mxu0 0.0
  %1599 = vmatpush1.msra.mxu0 0.0
  %1600 = vmatprep.subr.mxu0 0.0
  %1601 = vmatpush1.msra.mxu0 0.0
  %1602 = vmatprep.subr.mxu0 0.0
  %1603 = vmatpush1.msra.mxu0 0.0
  %1604 = vmatprep.subr.mxu0 0.0
  %1605 = vmatpush1.msra.mxu0 0.0
  %1606 = vmatprep.subr.mxu0 0.0
  %1607 = vmatpush1.msra.mxu0 0.0
  %1608 = vmatprep.subr.mxu0 0.0
  %1609 = vmatpush1.msra.mxu0 0.0
  %1610 = vmatprep.subr.mxu0 0.0
  %1611 = vmatpush1.msra.mxu0 0.0
  %1612 = vmatprep.subr.mxu0 0.0
  %1613 = vmatpush1.msra.mxu0 0.0
  %1614 = vmatprep.subr.mxu0 0.0
  %1615 = vmatpush1.msra.mxu0 0.0
  %1616 = vmatprep.subr.mxu0 0.0
  %1617 = vmatpush1.msra.mxu0 0.0
  %1618 = vmatprep.subr.mxu0 0.0
  %1619 = vmatpush1.msra.mxu0 0.0
  %1620 = vmatprep.subr.mxu0 0.0
  %1621 = vmatpush1.msra.mxu0 0.0
  %1622 = vmatprep.subr.mxu0 0.0
  %1623 = vmatpush1.msra.mxu0 0.0
  %1624 = vmatprep.subr.mxu0 0.0
  %1625 = vmatpush1.msra.mxu0 0.0
  %1626 = vmatprep.subr.mxu0 0.0
  %1627 = vmatpush1.msra.mxu0 0.0
  %1628 = vmatprep.subr.mxu0 0.0
  %1629 = vmatpush1.msra.mxu0 0.0
  %1630 = vmatprep.subr.mxu0 0.0
  %1631 = vmatpush1.msra.mxu0 0.0
  %1632 = vmatprep.subr.mxu0 0.0
  %1633 = vmatpush1.msra.mxu0 0.0
  %1634 = vmatprep.subr.mxu0 0.0
  %1635 = vmatpush1.msra.mxu0 0.0
  %1636 = vmatprep.subr.mxu0 0.0
  %1637 = vmatpush1.msra.mxu0 0.0
  %1638 = vmatprep.subr.mxu0 0.0
  %1639 = vmatpush1.msra.mxu0 0.0
  %1640 = vmatprep.subr.mxu0 0.0
  %1641 = vmatpush1.msra.mxu0 0.0
  %1642 = vmatprep.subr.mxu0 0.0
  %1643 = vmatpush1.msra.mxu0 0.0
  %1644 = vmatprep.mubr.f32.mxu0 0.0
  %1645 = vmatmul.mubr.f32.gmra.mrb[0].mxu0 %v1578
  %v1646 = vpop.f32.mrb[0].mxu0
  %v1647 = vadd.f32 0.0, %v1646
  %v1648 = vpop.f32.mrb[0].mxu0
  %1649 = vdwg.mxu0
  %v1650 = vadd.f32 %v1574, %v1647
  %v1651 = vxor.u32 %v1650, 2147483648
  %v1652 = vmul.f32 %v1651, 1.442695
  %v1653 = vpow.pop %v1652
  %v1654 = vadd.f32 %v1653, 1.0
  %v1655 = vrcp.pop %v1654
  %v1656 = vmul.f32 1.0, %v1655
  %v1657 = vmul.f32 %v1656, 2.0
  %v1658 = vsub.f32 %v1657, 1.0
  %v1659 = vmul.f32 %v1656, %v1462
  %1661 = vrot.lane.b32.xlu0 %v1658, 64
  %v1662 = vpop.permute.xlu0 %1661
  %v1664 = vmul.f32 %v1656, %v1662
  %1666 = vrot.lane.b32.xlu0 %v1664, 32
  %v1667 = vpop.permute.xlu0 %1666
  %v1669 = vadd.f32 %v1659, %v1667
  %v1670 = vtanh.pop %v1669
  %1672 = vrot.lane.b32.xlu0 %v1670, 64
  %v1673 = vpop.permute.xlu0 %1672
  %v1675 = vmul.f32 %v1656, %v1673
  %1678 = vrot.lane.b32.xlu0 %v1572, 64
  %v1679 = vpop.permute.xlu0 %1678
  %v1681 = vsel %vm216, %v1577, %v1679
  %v1683 = vsel %vm435, %v1681, 0
  %1685 = vmatprep.subr.mxu0 0.0
  %1686 = vmatpush1.msra.mxu0 %v200
  %1687 = vmatprep.subr.mxu0 0.0
  %1688 = vmatpush1.msra.mxu0 %v201
  %1689 = vmatprep.subr.mxu0 0.0
  %1690 = vmatpush1.msra.mxu0 %v202
  %1691 = vmatprep.subr.mxu0 0.0
  %1692 = vmatpush1.msra.mxu0 %v203
  %1693 = vmatprep.subr.mxu0 0.0
  %1694 = vmatpush1.msra.mxu0 %v204
  %1695 = vmatprep.subr.mxu0 0.0
  %1696 = vmatpush1.msra.mxu0 %v205
  %1697 = vmatprep.subr.mxu0 0.0
  %1698 = vmatpush1.msra.mxu0 %v206
  %1699 = vmatprep.subr.mxu0 0.0
  %1700 = vmatpush1.msra.mxu0 %v207
  %1701 = vmatprep.subr.mxu0 0.0
  %1702 = vmatpush1.msra.mxu0 0.0
  %1703 = vmatprep.subr.mxu0 0.0
  %1704 = vmatpush1.msra.mxu0 0.0
  %1705 = vmatprep.subr.mxu0 0.0
  %1706 = vmatpush1.msra.mxu0 0.0
  %1707 = vmatprep.subr.mxu0 0.0
  %1708 = vmatpush1.msra.mxu0 0.0
  %1709 = vmatprep.subr.mxu0 0.0
  %1710 = vmatpush1.msra.mxu0 0.0
  %1711 = vmatprep.subr.mxu0 0.0
  %1712 = vmatpush1.msra.mxu0 0.0
  %1713 = vmatprep.subr.mxu0 0.0
  %1714 = vmatpush1.msra.mxu0 0.0
  %1715 = vmatprep.subr.mxu0 0.0
  %1716 = vmatpush1.msra.mxu0 0.0
  %1717 = vmatprep.subr.mxu0 0.0
  %1718 = vmatpush1.msra.mxu0 0.0
  %1719 = vmatprep.subr.mxu0 0.0
  %1720 = vmatpush1.msra.mxu0 0.0
  %1721 = vmatprep.subr.mxu0 0.0
  %1722 = vmatpush1.msra.mxu0 0.0
  %1723 = vmatprep.subr.mxu0 0.0
  %1724 = vmatpush1.msra.mxu0 0.0
  %1725 = vmatprep.subr.mxu0 0.0
  %1726 = vmatpush1.msra.mxu0 0.0
  %1727 = vmatprep.subr.mxu0 0.0
  %1728 = vmatpush1.msra.mxu0 0.0
  %1729 = vmatprep.subr.mxu0 0.0
  %1730 = vmatpush1.msra.mxu0 0.0
  %1731 = vmatprep.subr.mxu0 0.0
  %1732 = vmatpush1.msra.mxu0 0.0
  %1733 = vmatprep.subr.mxu0 0.0
  %1734 = vmatpush1.msra.mxu0 0.0
  %1735 = vmatprep.subr.mxu0 0.0
  %1736 = vmatpush1.msra.mxu0 0.0
  %1737 = vmatprep.subr.mxu0 0.0
  %1738 = vmatpush1.msra.mxu0 0.0
  %1739 = vmatprep.subr.mxu0 0.0
  %1740 = vmatpush1.msra.mxu0 0.0
  %1741 = vmatprep.subr.mxu0 0.0
  %1742 = vmatpush1.msra.mxu0 0.0
  %1743 = vmatprep.subr.mxu0 0.0
  %1744 = vmatpush1.msra.mxu0 0.0
  %1745 = vmatprep.subr.mxu0 0.0
  %1746 = vmatpush1.msra.mxu0 0.0
  %1747 = vmatprep.subr.mxu0 0.0
  %1748 = vmatpush1.msra.mxu0 0.0
  %1749 = vmatprep.mubr.f32.mxu0 0.0
  %1750 = vmatmul.mubr.f32.gmra.mrb[0].mxu0 %v1683
  %v1751 = vpop.f32.mrb[0].mxu0
  %v1752 = vadd.f32 %v433, %v1751
  %v1753 = vpop.f32.mrb[0].mxu0
  %1754 = vdwg.mxu0
  %v1755 = vxor.u32 %v1752, 2147483648
  %v1756 = vmul.f32 %v1755, 1.442695
  %v1757 = vpow.pop %v1756
  %v1758 = vadd.f32 %v1757, 1.0
  %v1759 = vrcp.pop %v1758
  %v1760 = vmul.f32 1.0, %v1759
  %v1761 = vmul.f32 %v1760, 2.0
  %v1762 = vsub.f32 %v1761, 1.0
  %v1763 = vmul.f32 %v1760, %v1566
  %1765 = vrot.lane.b32.xlu0 %v1762, 64
  %v1766 = vpop.permute.xlu0 %1765
  %v1768 = vmul.f32 %v1760, %v1766
  %1770 = vrot.lane.b32.xlu0 %v1768, 32
  %v1771 = vpop.permute.xlu0 %1770
  %v1773 = vadd.f32 %v1763, %v1771
  %v1774 = vtanh.pop %v1773
  %1776 = vrot.lane.b32.xlu0 %v1774, 64
  %v1777 = vpop.permute.xlu0 %1776
  %v1779 = vmul.f32 %v1760, %v1777
  %1781 = vrot.lane.b32.xlu0 %v1675, 32
  %v1782 = vpop.permute.xlu0 %1781
  %1785 = vrot.lane.b32.xlu0 %v1779, 64
  %v1786 = vpop.permute.xlu0 %1785
  %v1788 = vsel %vm216, %v1782, %v1786
  %v1790 = vsel %vm435, %v1788, 0
  %1792 = vmatprep.subr.mxu0 0.0
  %1793 = vmatpush1.msra.mxu0 %v200
  %1794 = vmatprep.subr.mxu0 0.0
  %1795 = vmatpush1.msra.mxu0 %v201
  %1796 = vmatprep.subr.mxu0 0.0
  %1797 = vmatpush1.msra.mxu0 %v202
  %1798 = vmatprep.subr.mxu0 0.0
  %1799 = vmatpush1.msra.mxu0 %v203
  %1800 = vmatprep.subr.mxu0 0.0
  %1801 = vmatpush1.msra.mxu0 %v204
  %1802 = vmatprep.subr.mxu0 0.0
  %1803 = vmatpush1.msra.mxu0 %v205
  %1804 = vmatprep.subr.mxu0 0.0
  %1805 = vmatpush1.msra.mxu0 %v206
  %1806 = vmatprep.subr.mxu0 0.0
  %1807 = vmatpush1.msra.mxu0 %v207
  %1808 = vmatprep.subr.mxu0 0.0
  %1809 = vmatpush1.msra.mxu0 0.0
  %1810 = vmatprep.subr.mxu0 0.0
  %1811 = vmatpush1.msra.mxu0 0.0
  %1812 = vmatprep.subr.mxu0 0.0
  %1813 = vmatpush1.msra.mxu0 0.0
  %1814 = vmatprep.subr.mxu0 0.0
  %1815 = vmatpush1.msra.mxu0 0.0
  %1816 = vmatprep.subr.mxu0 0.0
  %1817 = vmatpush1.msra.mxu0 0.0
  %1818 = vmatprep.subr.mxu0 0.0
  %1819 = vmatpush1.msra.mxu0 0.0
  %1820 = vmatprep.subr.mxu0 0.0
  %1821 = vmatpush1.msra.mxu0 0.0
  %1822 = vmatprep.subr.mxu0 0.0
  %1823 = vmatpush1.msra.mxu0 0.0
  %1824 = vmatprep.subr.mxu0 0.0
  %1825 = vmatpush1.msra.mxu0 0.0
  %1826 = vmatprep.subr.mxu0 0.0
  %1827 = vmatpush1.msra.mxu0 0.0
  %1828 = vmatprep.subr.mxu0 0.0
  %1829 = vmatpush1.msra.mxu0 0.0
  %1830 = vmatprep.subr.mxu0 0.0
  %1831 = vmatpush1.msra.mxu0 0.0
  %1832 = vmatprep.subr.mxu0 0.0
  %1833 = vmatpush1.msra.mxu0 0.0
  %1834 = vmatprep.subr.mxu0 0.0
  %1835 = vmatpush1.msra.mxu0 0.0
  %1836 = vmatprep.subr.mxu0 0.0
  %1837 = vmatpush1.msra.mxu0 0.0
  %1838 = vmatprep.subr.mxu0 0.0
  %1839 = vmatpush1.msra.mxu0 0.0
  %1840 = vmatprep.subr.mxu0 0.0
  %1841 = vmatpush1.msra.mxu0 0.0
  %1842 = vmatprep.subr.mxu0 0.0
  %1843 = vmatpush1.msra.mxu0 0.0
  %1844 = vmatprep.subr.mxu0 0.0
  %1845 = vmatpush1.msra.mxu0 0.0
  %1846 = vmatprep.subr.mxu0 0.0
  %1847 = vmatpush1.msra.mxu0 0.0
  %1848 = vmatprep.subr.mxu0 0.0
  %1849 = vmatpush1.msra.mxu0 0.0
  %1850 = vmatprep.subr.mxu0 0.0
  %1851 = vmatpush1.msra.mxu0 0.0
  %1852 = vmatprep.subr.mxu0 0.0
  %1853 = vmatpush1.msra.mxu0 0.0
  %1854 = vmatprep.subr.mxu0 0.0
  %1855 = vmatpush1.msra.mxu0 0.0
  %1856 = vmatprep.mubr.f32.mxu0 0.0
  %1857 = vmatmul.mubr.f32.gmra.mrb[0].mxu0 %v1790
  %v1858 = vpop.f32.mrb[0].mxu0
  %v1859 = vadd.f32 %v433, %v1858
  %v1860 = vpop.f32.mrb[0].mxu0
  %1861 = vdwg.mxu0
  %v1862 = vxor.u32 %v1859, 2147483648
  %v1863 = vmul.f32 %v1862, 1.442695
  %v1864 = vpow.pop %v1863
  %v1865 = vadd.f32 %v1864, 1.0
  %v1866 = vrcp.pop %v1865
  %v1867 = vmul.f32 1.0, %v1866
  %v1868 = vmul.f32 %v1867, 2.0
  %v1869 = vsub.f32 %v1868, 1.0
  %v1870 = vmul.f32 %v1867, %v1773
  %1872 = vrot.lane.b32.xlu0 %v1869, 64
  %v1873 = vpop.permute.xlu0 %1872
  %v1875 = vmul.f32 %v1867, %v1873
  %1877 = vrot.lane.b32.xlu0 %v1875, 32
  %v1878 = vpop.permute.xlu0 %1877
  %v1880 = vadd.f32 %v1870, %v1878
  %v1881 = vtanh.pop %v1880
  %1883 = vrot.lane.b32.xlu0 %v1881, 64
  %v1884 = vpop.permute.xlu0 %1883
  %v1886 = vmul.f32 %v1867, %v1884
  %1887 = vst.msk [vmem:[%s11] sm:$0xff] %vm216, %v1782
  %1889 = vrot.lane.b32.xlu0 %v1669, 96
  %v1890 = vpop.permute.xlu0 %1889
  %1892 = vst.msk [vmem:[%s12] sm:$0xff] %vm216, %v1890
  %1894 = vrot.lane.b32.xlu0 %v1886, 32
  %v1895 = vpop.permute.xlu0 %1894
  %s1897 = scalar_lea.vmem %s11, 8
  %1898 = vst.msk [vmem:[%s1897] sm:$0xff] %vm216, %v1895
  %1900 = vrot.lane.b32.xlu0 %v1880, 96
  %v1901 = vpop.permute.xlu0 %1900
  %s1903 = scalar_lea.vmem %s12, 8
  %1904 = vst.msk [vmem:[%s1903] sm:$0xff] %vm216, %v1901
  %v1905 = vmul.f32 %v537, %v537
  %1907 = vrot.lane.b32.xlu0 %v1905, 32
  %v1908 = vpop.permute.xlu0 %1907
  %v1910 = vsel %vm216, %v1908, 0.0
  %1911 = vadd.xlane.f32.xlu0 %v1910
  %v1912 = vpop.xlane.xlu0 %1911
  %v1913 = vmax.f32 %v1912, 1e-24
  %v1914 = vrsqrt.pop %v1913
  %v1915 = vmul.f32 %v537, %v1914
  %v1916 = vld [vmem:[%s8] sm:$0xff]
  %v1917 = vld [vmem:[%s8 + $0x8] sm:$0xff]
  %v1918 = vld [vmem:[%s8 + $0x10] sm:$0xff]
  %v1919 = vld [vmem:[%s8 + $0x18] sm:$0xff]
  %v1920 = vld [vmem:[%s9] sm:$0x1]
  %v1922 = vlaneseq
  %v1923 = vshrl.u32 %v1922, 7
  %v1924 = vsub.s32 0, %v1923
  %v1925 = vrot.slane %v1920, %v1924
  %1928 = vrot.lane.b32.xlu0 %v1915, 32
  %v1929 = vpop.permute.xlu0 %1928
  %v1930 = vsel %vm216, %v1929, 0
  %1932 = vmatprep.subr.mxu0 0.0
  %1933 = vmatpush1.msra.mxu0 %v1916
  %1934 = vmatprep.subr.mxu0 0.0
  %1935 = vmatpush1.msra.mxu0 %v1917
  %1936 = vmatprep.subr.mxu0 0.0
  %1937 = vmatpush1.msra.mxu0 %v1918
  %1938 = vmatprep.subr.mxu0 0.0
  %1939 = vmatpush1.msra.mxu0 %v1919
  %1940 = vmatprep.subr.mxu0 0.0
  %1941 = vmatpush1.msra.mxu0 0.0
  %1942 = vmatprep.subr.mxu0 0.0
  %1943 = vmatpush1.msra.mxu0 0.0
  %1944 = vmatprep.subr.mxu0 0.0
  %1945 = vmatpush1.msra.mxu0 0.0
  %1946 = vmatprep.subr.mxu0 0.0
  %1947 = vmatpush1.msra.mxu0 0.0
  %1948 = vmatprep.subr.mxu0 0.0
  %1949 = vmatpush1.msra.mxu0 0.0
  %1950 = vmatprep.subr.mxu0 0.0
  %1951 = vmatpush1.msra.mxu0 0.0
  %1952 = vmatprep.subr.mxu0 0.0
  %1953 = vmatpush1.msra.mxu0 0.0
  %1954 = vmatprep.subr.mxu0 0.0
  %1955 = vmatpush1.msra.mxu0 0.0
  %1956 = vmatprep.subr.mxu0 0.0
  %1957 = vmatpush1.msra.mxu0 0.0
  %1958 = vmatprep.subr.mxu0 0.0
  %1959 = vmatpush1.msra.mxu0 0.0
  %1960 = vmatprep.subr.mxu0 0.0
  %1961 = vmatpush1.msra.mxu0 0.0
  %1962 = vmatprep.subr.mxu0 0.0
  %1963 = vmatpush1.msra.mxu0 0.0
  %1964 = vmatprep.subr.mxu0 0.0
  %1965 = vmatpush1.msra.mxu0 0.0
  %1966 = vmatprep.subr.mxu0 0.0
  %1967 = vmatpush1.msra.mxu0 0.0
  %1968 = vmatprep.subr.mxu0 0.0
  %1969 = vmatpush1.msra.mxu0 0.0
  %1970 = vmatprep.subr.mxu0 0.0
  %1971 = vmatpush1.msra.mxu0 0.0
  %1972 = vmatprep.subr.mxu0 0.0
  %1973 = vmatpush1.msra.mxu0 0.0
  %1974 = vmatprep.subr.mxu0 0.0
  %1975 = vmatpush1.msra.mxu0 0.0
  %1976 = vmatprep.subr.mxu0 0.0
  %1977 = vmatpush1.msra.mxu0 0.0
  %1978 = vmatprep.subr.mxu0 0.0
  %1979 = vmatpush1.msra.mxu0 0.0
  %1980 = vmatprep.subr.mxu0 0.0
  %1981 = vmatpush1.msra.mxu0 0.0
  %1982 = vmatprep.subr.mxu0 0.0
  %1983 = vmatpush1.msra.mxu0 0.0
  %1984 = vmatprep.subr.mxu0 0.0
  %1985 = vmatpush1.msra.mxu0 0.0
  %1986 = vmatprep.subr.mxu0 0.0
  %1987 = vmatpush1.msra.mxu0 0.0
  %1988 = vmatprep.subr.mxu0 0.0
  %1989 = vmatpush1.msra.mxu0 0.0
  %1990 = vmatprep.subr.mxu0 0.0
  %1991 = vmatpush1.msra.mxu0 0.0
  %1992 = vmatprep.subr.mxu0 0.0
  %1993 = vmatpush1.msra.mxu0 0.0
  %1994 = vmatprep.subr.mxu0 0.0
  %1995 = vmatpush1.msra.mxu0 0.0
  %1996 = vmatprep.mubr.f32.mxu0 0.0
  %1997 = vmatmul.mubr.f32.gmra.mrb[0].mxu0 %v1930
  %v1998 = vpop.f32.mrb[0].mxu0
  %v1999 = vadd.f32 %v1925, %v1998
  %v2000 = vpop.f32.mrb[0].mxu0
  %2001 = vdwg.mxu0
  %vm2002 = vcmask 23552
  %2003 = vst.msk [vmem:[%s10] sm:$0xff] %vm2002, %v1999
  // Predicated region
  $region42: #{_lstm_forward.1} parent=0 // pred_check
    _
  $region43: #{_lstm_forward.1} parent=0 // pred_check_branch
    %2005 = sbr.rel (0) target = $region45
  $region44: #{_lstm_forward.1} parent=0 // pred_region
    _
  $region45: #{_lstm_forward.1} parent=0 // pred_fallthru
    _
  // Predicated region
  $region46: #{_lstm_forward.1} parent=0 // pred_check
    _
  $region47: #{_lstm_forward.1} parent=0 // pred_check_branch
    %2007 = sbr.rel (0) target = $region49
  $region48: #{_lstm_forward.1} parent=0 // pred_region
    _
  $region49: #{_lstm_forward.1} parent=0 // pred_fallthru
    _
  // Predicated region
  $region50: #{_lstm_forward.1} parent=0 // pred_check
    _
  $region51: #{_lstm_forward.1} parent=0 // pred_check_branch
    %2009 = sbr.rel (0) target = $region53
  $region52: #{_lstm_forward.1} parent=0 // pred_region
    _
  $region53: #{_lstm_forward.1} parent=0 // pred_fallthru
    _
  // Predicated region
  $region54: #{_lstm_forward.1} parent=0 // pred_check
    _
  $region55: #{_lstm_forward.1} parent=0 // pred_check_branch
    %2011 = sbr.rel (0) target = $region57
  $region56: #{_lstm_forward.1} parent=0 // pred_region
    _
  $region57: #{_lstm_forward.1} parent=0 // pred_fallthru
    _
  // Predicated region
  $region58: #{_lstm_forward.1} parent=0 // pred_check
    _
  $region59: #{_lstm_forward.1} parent=0 // pred_check_branch
    %2013 = sbr.rel (0) target = $region61
  $region60: #{_lstm_forward.1} parent=0 // pred_region
    _
  $region61: #{_lstm_forward.1} parent=0 // pred_fallthru
    _
  // Predicated region
  $region62: #{_lstm_forward.1} parent=0 // pred_check
    _
  $region63: #{_lstm_forward.1} parent=0 // pred_check_branch
    %2015 = sbr.rel (0) target = $region65
  $region64: #{_lstm_forward.1} parent=0 // pred_region
    _
  $region65: #{_lstm_forward.1} parent=0 // pred_fallthru
    _

</llo_original>
